<compile_context>
chip_gen: v7x
topology: tpu7x:2x2x1
jax: 0.10.0
libtpu: 0.0.40
codegen_flags: <defaults>
</compile_context>

<pallas_src>
import math
from functools import partial

import jax
import jax.numpy as jnp
from jax.experimental import pallas as pl
from jax.experimental.pallas import tpu as pltpu


def _self_attention_kernel(q_ref, k_ref, v_ref,
                           wq_ref, wk_ref, wv_ref,
                           woT_ref, bo_ref,
                           out_ref,
                           ctx_sc):
    Bt, H, Lq, hd = q_ref.shape
    Lk = k_ref.shape[2]
    E = H * hd
    scale = 1.0 / math.sqrt(float(E))

    # ---- shared per-head Linear projections -------------------------------
    # One matmul per Q/K/V over all (batch, head, position) rows.
    # (reshape first on f32 -- leading-dim collapse, layout-free -- then cast)
    q = q_ref[...].reshape(Bt * H * Lq, hd).astype(jnp.bfloat16)
    k = k_ref[...].reshape(Bt * H * Lk, hd).astype(jnp.bfloat16)
    v = v_ref[...].reshape(Bt * H * Lk, hd).astype(jnp.bfloat16)

    q_p = jnp.dot(q, wq_ref[...], preferred_element_type=jnp.float32) * scale
    k_p = jnp.dot(k, wk_ref[...], preferred_element_type=jnp.float32)
    v_p = jnp.dot(v, wv_ref[...], preferred_element_type=jnp.float32)

    qb = q_p.reshape(Bt * H, Lq, hd).astype(jnp.bfloat16)
    kb = k_p.reshape(Bt * H, Lk, hd).astype(jnp.bfloat16)
    vb = v_p.reshape(Bt * H, Lk, hd).astype(jnp.bfloat16)

    # ---- batched attention over all batch*head pairs ----------------------
    energy = jnp.einsum('bqd,bkd->bqk', qb, kb,
                        preferred_element_type=jnp.float32)   # (Bt*H, Lq, Lk)

    m = jnp.max(energy, axis=-1, keepdims=True)
    p = jnp.exp(energy - m)
    denom = jnp.sum(p, axis=-1, keepdims=True)
    attn = p * pl.reciprocal(denom, approx=True)              # EUP slot

    ctx = jnp.einsum('bqk,bkd->bqd', attn.astype(jnp.bfloat16), vb,
                     preferred_element_type=jnp.float32)      # (Bt*H, Lq, hd)

    # ---- regroup heads into the E feature axis (VMEM scratch) -------------
    # No per-head matmuls: only H static column stores, then ONE fc_out matmul
    # with a full K=E contraction.
    ctx4 = ctx.reshape(Bt, H, Lq, hd)
    for h in range(H):
        ctx_sc[:, h * hd:(h + 1) * hd] = ctx4[:, h].reshape(Bt * Lq, hd)

    out2 = jnp.dot(ctx_sc[...].astype(jnp.bfloat16), woT_ref[...],
                   preferred_element_type=jnp.float32)        # (Bt*Lq, E)
    out2 = out2 + bo_ref[...]                                 # (1, E) bias
    out_ref[...] = out2.reshape(Bt, Lq, E).astype(out_ref.dtype)


def _choose_batch_tile(N, heads, Lq, Lk, head_dim, embed, itemsize=4,
                       target_bytes=2 * 1024 * 1024):
    """Largest divisor of N whose per-step blocks stay around `target_bytes`.

    No ">= 2 grid steps" constraint (only relevant to v7x's 2 TCs and it just
    shrinks blocks on 1-TC chips).  Footprint is computed with lane padding
    (head_dim < 128 pads each row to a full lane group in VMEM).
    """
    lane = 128
    per_batch = (heads * (Lq + 2 * Lk) * lane * itemsize      # q, k, v blocks
                 + Lq * max(embed, lane) * itemsize)          # output block
    cand = max(1, min(N, target_bytes // max(per_batch, 1)))
    divisors = [d for d in range(1, N + 1) if N % d == 0 and d <= cand]
    # Prefer multiples of 8 (sublane / MXU M-dim friendly); any divisor is valid
    # because every block keeps the trailing array dims at full extent.
    preferred = [d for d in divisors if d == N or d % 8 == 0]
    return max(preferred) if preferred else max(divisors)


@partial(jax.jit, static_argnames=("embed_size", "heads"))
def self_attention_pallas(query, key, value, wq, wk, wv, wo, bo,
                          *, embed_size, heads):
    """query/key/value: (N, L, E) f32; wq/wk/wv: (hd, hd) shared PyTorch Linear
    weights (one Linear applied to every head); wo: (E, E); bo: (E,)."""
    N, Lq, E = query.shape
    _, Lk, _ = key.shape
    _, Lv, _ = value.shape
    head_dim = embed_size // heads
    assert E == embed_size and head_dim * heads == embed_size
    assert Lk == Lv

    # Head-major activations prepared by XLA outside the kernel:
    # (N, L, E) -> (N, H, L, hd).  This lets the kernel batch attention over
    # N*H with a single leading batch dim and removes all in-kernel transposes
    # and per-head lane slicing.
    def head_major(x, L):
        return x.reshape(N, L, heads, head_dim).transpose(0, 2, 1, 3)

    q_hm = head_major(query, Lq)
    k_hm = head_major(key, Lk)
    v_hm = head_major(value, Lv)

    # Pre-transposed weights, bf16 for the MXU (f32 accumulation in-kernel).
    # The softmax scale is applied in f32 inside the kernel, not baked in here.
    wqT = wq.T.astype(jnp.bfloat16)
    wkT = wk.T.astype(jnp.bfloat16)
    wvT = wv.T.astype(jnp.bfloat16)
    woT = wo.T.astype(jnp.bfloat16)
    bo2 = bo.reshape(1, E).astype(jnp.float32)

    b_tile = _choose_batch_tile(N, heads, Lq, Lk, head_dim, E,
                                query.dtype.itemsize)
    grid = (N // b_tile,)

    # Constant index maps keep the weight/bias blocks resident across steps
    # (no re-DMA); pipeline_mode=pl.Buffered(1) would only trim their second
    # (unused) pipeline buffer.
    return pl.pallas_call(
        _self_attention_kernel,
        out_shape=jax.ShapeDtypeStruct((N, Lq, E), query.dtype),
        grid_spec=pltpu.PrefetchScalarGridSpec(
            num_scalar_prefetch=0,
            grid=grid,
            in_specs=[
                pl.BlockSpec((b_tile, heads, Lq, head_dim),
                             lambda n: (n, 0, 0, 0)),
                pl.BlockSpec((b_tile, heads, Lk, head_dim),
                             lambda n: (n, 0, 0, 0)),
                pl.BlockSpec((b_tile, heads, Lv, head_dim),
                             lambda n: (n, 0, 0, 0)),
                pl.BlockSpec((head_dim, head_dim), lambda n: (0, 0)),
                pl.BlockSpec((head_dim, head_dim), lambda n: (0, 0)),
                pl.BlockSpec((head_dim, head_dim), lambda n: (0, 0)),
                pl.BlockSpec((E, E), lambda n: (0, 0)),
                pl.BlockSpec((1, E), lambda n: (0, 0)),
            ],
            out_specs=pl.BlockSpec((b_tile, Lq, E), lambda n: (n, 0, 0)),
            scratch_shapes=[pltpu.VMEM((b_tile * Lq, E), jnp.float32)],
        ),
        compiler_params=pltpu.CompilerParams(
            dimension_semantics=("parallel",),
            # Above the default scoped limit, below v7x's 64 MiB physical VMEM.
            vmem_limit_bytes=48 * 1024 * 1024,
        ),
    )(q_hm, k_hm, v_hm, wqT, wkT, wvT, woT, bo2)


def self_attention_ref(query, key, value, wq, wk, wv, wo, bo,
                       *, embed_size, heads):
    """Pure-JAX f32 reference mirroring the PyTorch forward exactly."""
    N, Lq, E = query.shape
    Lk = key.shape[1]
    Lv = value.shape[1]
    hd = embed_size // heads

    q = query.reshape(N, Lq, heads, hd) @ wq.T    # shared Linear on last dim
    k = key.reshape(N, Lk, heads, hd) @ wk.T
    v = value.reshape(N, Lv, heads, hd) @ wv.T

    energy = jnp.einsum('nqhd,nkhd->nhqk', q, k)
    attn = jax.nn.softmax(energy / (embed_size ** 0.5), axis=3)
    out = jnp.einsum('nhql,nlhd->nqhd', attn, v).reshape(N, Lq, heads * hd)
    return out @ wo.T + bo


if __name__ == "__main__":
    # Small shapes consistent with the module: embed_size=32, heads=4 -> head_dim=8.
    N, L, E, H = 2, 8, 32, 4
    hd = E // H

    key0 = jax.random.PRNGKey(0)
    kq, kk, kv, kwq, kwk, kwv, kwo, kbo = jax.random.split(key0, 8)

    query = jax.random.normal(kq, (N, L, E), dtype=jnp.float32)
    key_in = jax.random.normal(kk, (N, L, E), dtype=jnp.float32)
    value = jax.random.normal(kv, (N, L, E), dtype=jnp.float32)

    # PyTorch module: one (hd, hd) bias-free Linear shared across heads per Q/K/V.
    s = 1.0 / math.sqrt(hd)
    wq = jax.random.uniform(kwq, (hd, hd), jnp.float32, -s, s)
    wk = jax.random.uniform(kwk, (hd, hd), jnp.float32, -s, s)
    wv = jax.random.uniform(kwv, (hd, hd), jnp.float32, -s, s)

    so = 1.0 / math.sqrt(E)
    wo = jax.random.uniform(kwo, (E, E), jnp.float32, -so, so)
    bo = jax.random.uniform(kbo, (E,), jnp.float32, -so, so)

    out = self_attention_pallas(query, key_in, value, wq, wk, wv, wo, bo,
                                embed_size=E, heads=H)
    out = jax.block_until_ready(out)

    ref = self_attention_ref(query, key_in, value, wq, wk, wv, wo, bo,
                             embed_size=E, heads=H)
    assert out.shape == (N, L, E)
    # bf16 MXU operands + approx reciprocal in the softmax denominator
    # -> slightly looser tolerance than a pure-f32 kernel.
    assert jnp.allclose(out, ref, atol=1e-2, rtol=1e-2), (
        f"mismatch vs reference: max |diff| = {jnp.max(jnp.abs(out - ref))}")

    print("KERNEL_OK")
</pallas_src>

<mosaic_0001>
module attributes {stable_mosaic.version = 11 : i64} {
  func.func @_self_attention_kernel(%arg0: i32, %arg1: memref<2x4x8x8xf32, #tpu.memory_space<vmem>>, %arg2: memref<2x4x8x8xf32, #tpu.memory_space<vmem>>, %arg3: memref<2x4x8x8xf32, #tpu.memory_space<vmem>>, %arg4: memref<8x8xbf16, #tpu.memory_space<vmem>>, %arg5: memref<8x8xbf16, #tpu.memory_space<vmem>>, %arg6: memref<8x8xbf16, #tpu.memory_space<vmem>>, %arg7: memref<32x32xbf16, #tpu.memory_space<vmem>>, %arg8: memref<1x32xf32, #tpu.memory_space<vmem>>, %arg9: memref<2x8x32xf32, #tpu.memory_space<vmem>>, %arg10: memref<16x32xf32, #tpu.memory_space<vmem>>) attributes {dimension_semantics = [#tpu.dimension_semantics<parallel>], iteration_bounds = array<i64: 1>, scalar_prefetch = 0 : i64, scratch_operands = 1 : i64, tpu.core_type = #tpu.core_type<tc>, window_params = [{transform_indices = @transform_0, window_bounds = array<i64: 2, 4, 8, 8>}, {transform_indices = @transform_1, window_bounds = array<i64: 2, 4, 8, 8>}, {transform_indices = @transform_2, window_bounds = array<i64: 2, 4, 8, 8>}, {pipeline_mode = #tpu.pipeline_mode<synchronous>, transform_indices = @transform_3, window_bounds = array<i64: 8, 8>}, {pipeline_mode = #tpu.pipeline_mode<synchronous>, transform_indices = @transform_4, window_bounds = array<i64: 8, 8>}, {pipeline_mode = #tpu.pipeline_mode<synchronous>, transform_indices = @transform_5, window_bounds = array<i64: 8, 8>}, {pipeline_mode = #tpu.pipeline_mode<synchronous>, transform_indices = @transform_6, window_bounds = array<i64: 32, 32>}, {pipeline_mode = #tpu.pipeline_mode<synchronous>, transform_indices = @transform_7, window_bounds = array<i64: 1, 32>}, {transform_indices = @transform_8, window_bounds = array<i64: 2, 8, 32>}]} {
    %c0 = arith.constant 0 : index
    %c0_0 = arith.constant 0 : index
    %c0_1 = arith.constant 0 : index
    %c0_2 = arith.constant 0 : index
    %0 = vector.load %arg1[%c0, %c0_0, %c0_1, %c0_2] : memref<2x4x8x8xf32, #tpu.memory_space<vmem>>, vector<2x4x8x8xf32>
    %1 = vector.shape_cast %0 : vector<2x4x8x8xf32> to vector<64x8xf32>
    %2 = arith.truncf %1 : vector<64x8xf32> to vector<64x8xbf16>
    %c0_3 = arith.constant 0 : index
    %c0_4 = arith.constant 0 : index
    %c0_5 = arith.constant 0 : index
    %c0_6 = arith.constant 0 : index
    %3 = vector.load %arg2[%c0_3, %c0_4, %c0_5, %c0_6] : memref<2x4x8x8xf32, #tpu.memory_space<vmem>>, vector<2x4x8x8xf32>
    %4 = vector.shape_cast %3 : vector<2x4x8x8xf32> to vector<64x8xf32>
    %5 = arith.truncf %4 : vector<64x8xf32> to vector<64x8xbf16>
    %c0_7 = arith.constant 0 : index
    %c0_8 = arith.constant 0 : index
    %c0_9 = arith.constant 0 : index
    %c0_10 = arith.constant 0 : index
    %6 = vector.load %arg3[%c0_7, %c0_8, %c0_9, %c0_10] : memref<2x4x8x8xf32, #tpu.memory_space<vmem>>, vector<2x4x8x8xf32>
    %7 = vector.shape_cast %6 : vector<2x4x8x8xf32> to vector<64x8xf32>
    %8 = arith.truncf %7 : vector<64x8xf32> to vector<64x8xbf16>
    %c0_11 = arith.constant 0 : index
    %c0_12 = arith.constant 0 : index
    %9 = vector.load %arg4[%c0_11, %c0_12] : memref<8x8xbf16, #tpu.memory_space<vmem>>, vector<8x8xbf16>
    %cst = arith.constant dense<0.000000e+00> : vector<64x8xf32>
    %10 = tpu.matmul %2, %9, %cst {dimension_numbers = #tpu.dot_dimension_numbers<[1], [0], [0], [1], [0, 0, 1, 1], [], []>} : vector<64x8xbf16>, vector<8x8xbf16>, vector<64x8xf32> -> vector<64x8xf32>
    %cst_13 = arith.constant 0.176776692 : f32
    %11 = vector.broadcast %cst_13 : f32 to vector<64x8xf32>
    %12 = arith.mulf %10, %11 : vector<64x8xf32>
    %c0_14 = arith.constant 0 : index
    %c0_15 = arith.constant 0 : index
    %13 = vector.load %arg5[%c0_14, %c0_15] : memref<8x8xbf16, #tpu.memory_space<vmem>>, vector<8x8xbf16>
    %cst_16 = arith.constant dense<0.000000e+00> : vector<64x8xf32>
    %14 = tpu.matmul %5, %13, %cst_16 {dimension_numbers = #tpu.dot_dimension_numbers<[1], [0], [0], [1], [0, 0, 1, 1], [], []>} : vector<64x8xbf16>, vector<8x8xbf16>, vector<64x8xf32> -> vector<64x8xf32>
    %c0_17 = arith.constant 0 : index
    %c0_18 = arith.constant 0 : index
    %15 = vector.load %arg6[%c0_17, %c0_18] : memref<8x8xbf16, #tpu.memory_space<vmem>>, vector<8x8xbf16>
    %cst_19 = arith.constant dense<0.000000e+00> : vector<64x8xf32>
    %16 = tpu.matmul %8, %15, %cst_19 {dimension_numbers = #tpu.dot_dimension_numbers<[1], [0], [0], [1], [0, 0, 1, 1], [], []>} : vector<64x8xbf16>, vector<8x8xbf16>, vector<64x8xf32> -> vector<64x8xf32>
    %17 = vector.shape_cast %12 : vector<64x8xf32> to vector<8x8x8xf32>
    %18 = arith.truncf %17 : vector<8x8x8xf32> to vector<8x8x8xbf16>
    %19 = vector.shape_cast %14 : vector<64x8xf32> to vector<8x8x8xf32>
    %20 = arith.truncf %19 : vector<8x8x8xf32> to vector<8x8x8xbf16>
    %21 = vector.shape_cast %16 : vector<64x8xf32> to vector<8x8x8xf32>
    %22 = arith.truncf %21 : vector<8x8x8xf32> to vector<8x8x8xbf16>
    "tpu.trace_start"() <{level = 10 : i32, message = "bqd,bkd->bqk"}> : () -> ()
    %cst_20 = arith.constant dense<0.000000e+00> : vector<8x8x8xf32>
    %23 = tpu.matmul %18, %20, %cst_20 {dimension_numbers = #tpu.dot_dimension_numbers<[2], [2], [1], [1], [0, 0, 0, 1, 1, 1], [0], [0]>} : vector<8x8x8xbf16>, vector<8x8x8xbf16>, vector<8x8x8xf32> -> vector<8x8x8xf32>
    "tpu.trace_stop"() : () -> ()
    %cst_21 = arith.constant dense<0xFF800000> : vector<8x8xf32>
    %24 = vector.multi_reduction <maximumf>, %23, %cst_21 [2] : vector<8x8x8xf32> to vector<8x8xf32>
    %25 = vector.shape_cast %24 : vector<8x8xf32> to vector<8x8x1xf32>
    %26 = vector.broadcast %25 : vector<8x8x1xf32> to vector<8x8x8xf32>
    %27 = arith.subf %23, %26 : vector<8x8x8xf32>
    %28 = math.exp %27 : vector<8x8x8xf32>
    %cst_22 = arith.constant dense<0.000000e+00> : vector<8x8xf32>
    %29 = vector.multi_reduction <add>, %28, %cst_22 [2] : vector<8x8x8xf32> to vector<8x8xf32>
    %30 = vector.shape_cast %29 : vector<8x8xf32> to vector<8x8x1xf32>
    %31 = tpu.reciprocal %30 {approx = true} : vector<8x8x1xf32> -> vector<8x8x1xf32>
    %32 = vector.broadcast %31 : vector<8x8x1xf32> to vector<8x8x8xf32>
    %33 = arith.mulf %28, %32 : vector<8x8x8xf32>
    %34 = arith.truncf %33 : vector<8x8x8xf32> to vector<8x8x8xbf16>
    "tpu.trace_start"() <{level = 10 : i32, message = "bqk,bkd->bqd"}> : () -> ()
    %cst_23 = arith.constant dense<0.000000e+00> : vector<8x8x8xf32>
    %35 = tpu.matmul %34, %22, %cst_23 {dimension_numbers = #tpu.dot_dimension_numbers<[2], [1], [1], [2], [0, 0, 0, 1, 1, 2], [0], [0]>} : vector<8x8x8xbf16>, vector<8x8x8xbf16>, vector<8x8x8xf32> -> vector<8x8x8xf32>
    "tpu.trace_stop"() : () -> ()
    %36 = vector.shape_cast %35 : vector<8x8x8xf32> to vector<2x4x8x8xf32>
    %37 = vector.extract_strided_slice %36 {offsets = [0, 0, 0, 0], sizes = [2, 1, 8, 8], strides = [1, 1, 1, 1]} : vector<2x4x8x8xf32> to vector<2x1x8x8xf32>
    %38 = vector.shape_cast %37 : vector<2x1x8x8xf32> to vector<2x8x8xf32>
    %39 = vector.shape_cast %38 : vector<2x8x8xf32> to vector<16x8xf32>
    %c0_24 = arith.constant 0 : index
    %c0_25 = arith.constant 0 : index
    %40 = vector.load %arg10[%c0_24, %c0_25] : memref<16x32xf32, #tpu.memory_space<vmem>>, vector<16x8xf32>
    tpu.vector_store %arg10[%c0_24, %c0_25], %39 {strides = array<i32>} : memref<16x32xf32, #tpu.memory_space<vmem>>, vector<16x8xf32>,
    %41 = vector.extract_strided_slice %36 {offsets = [0, 1, 0, 0], sizes = [2, 1, 8, 8], strides = [1, 1, 1, 1]} : vector<2x4x8x8xf32> to vector<2x1x8x8xf32>
    %42 = vector.shape_cast %41 : vector<2x1x8x8xf32> to vector<2x8x8xf32>
    %43 = vector.shape_cast %42 : vector<2x8x8xf32> to vector<16x8xf32>
    %c0_26 = arith.constant 0 : index
    %c8 = arith.constant 8 : index
    %44 = vector.load %arg10[%c0_26, %c8] : memref<16x32xf32, #tpu.memory_space<vmem>>, vector<16x8xf32>
    tpu.vector_store %arg10[%c0_26, %c8], %43 {strides = array<i32>} : memref<16x32xf32, #tpu.memory_space<vmem>>, vector<16x8xf32>,
    %45 = vector.extract_strided_slice %36 {offsets = [0, 2, 0, 0], sizes = [2, 1, 8, 8], strides = [1, 1, 1, 1]} : vector<2x4x8x8xf32> to vector<2x1x8x8xf32>
    %46 = vector.shape_cast %45 : vector<2x1x8x8xf32> to vector<2x8x8xf32>
    %47 = vector.shape_cast %46 : vector<2x8x8xf32> to vector<16x8xf32>
    %c0_27 = arith.constant 0 : index
    %c16 = arith.constant 16 : index
    %48 = vector.load %arg10[%c0_27, %c16] : memref<16x32xf32, #tpu.memory_space<vmem>>, vector<16x8xf32>
    tpu.vector_store %arg10[%c0_27, %c16], %47 {strides = array<i32>} : memref<16x32xf32, #tpu.memory_space<vmem>>, vector<16x8xf32>,
    %49 = vector.extract_strided_slice %36 {offsets = [0, 3, 0, 0], sizes = [2, 1, 8, 8], strides = [1, 1, 1, 1]} : vector<2x4x8x8xf32> to vector<2x1x8x8xf32>
    %50 = vector.shape_cast %49 : vector<2x1x8x8xf32> to vector<2x8x8xf32>
    %51 = vector.shape_cast %50 : vector<2x8x8xf32> to vector<16x8xf32>
    %c0_28 = arith.constant 0 : index
    %c24 = arith.constant 24 : index
    %52 = vector.load %arg10[%c0_28, %c24] : memref<16x32xf32, #tpu.memory_space<vmem>>, vector<16x8xf32>
    tpu.vector_store %arg10[%c0_28, %c24], %51 {strides = array<i32>} : memref<16x32xf32, #tpu.memory_space<vmem>>, vector<16x8xf32>,
    %c0_29 = arith.constant 0 : index
    %c0_30 = arith.constant 0 : index
    %53 = vector.load %arg10[%c0_29, %c0_30] : memref<16x32xf32, #tpu.memory_space<vmem>>, vector<16x32xf32>
    %54 = arith.truncf %53 : vector<16x32xf32> to vector<16x32xbf16>
    %c0_31 = arith.constant 0 : index
    %c0_32 = arith.constant 0 : index
    %55 = vector.load %arg7[%c0_31, %c0_32] : memref<32x32xbf16, #tpu.memory_space<vmem>>, vector<32x32xbf16>
    %cst_33 = arith.constant dense<0.000000e+00> : vector<16x32xf32>
    %56 = tpu.matmul %54, %55, %cst_33 {dimension_numbers = #tpu.dot_dimension_numbers<[1], [0], [0], [1], [0, 0, 1, 1], [], []>} : vector<16x32xbf16>, vector<32x32xbf16>, vector<16x32xf32> -> vector<16x32xf32>
    %c0_34 = arith.constant 0 : index
    %c0_35 = arith.constant 0 : index
    %57 = vector.load %arg8[%c0_34, %c0_35] : memref<1x32xf32, #tpu.memory_space<vmem>>, vector<1x32xf32>
    %58 = vector.broadcast %57 : vector<1x32xf32> to vector<16x32xf32>
    %59 = arith.addf %56, %58 : vector<16x32xf32>
    %60 = vector.shape_cast %59 : vector<16x32xf32> to vector<2x8x32xf32>
    %c0_36 = arith.constant 0 : index
    %c0_37 = arith.constant 0 : index
    %c0_38 = arith.constant 0 : index
    %61 = vector.load %arg9[%c0_36, %c0_37, %c0_38] : memref<2x8x32xf32, #tpu.memory_space<vmem>>, vector<2x8x32xf32>
    tpu.vector_store %arg9[%c0_36, %c0_37, %c0_38], %60 {strides = array<i32>} : memref<2x8x32xf32, #tpu.memory_space<vmem>>, vector<2x8x32xf32>,
    return
  }
  func.func @transform_0(%arg0: i32) -> (i32, i32, i32, i32) {
    %c0_i32 = arith.constant 0 : i32
    %c0_i32_0 = arith.constant 0 : i32
    %c0_i32_1 = arith.constant 0 : i32
    %c0_i32_2 = arith.constant 0 : i32
    return %arg0, %c0_i32, %c0_i32_0, %c0_i32_1 : i32, i32, i32, i32
  }
  func.func @transform_1(%arg0: i32) -> (i32, i32, i32, i32) {
    %c0_i32 = arith.constant 0 : i32
    %c0_i32_0 = arith.constant 0 : i32
    %c0_i32_1 = arith.constant 0 : i32
    %c0_i32_2 = arith.constant 0 : i32
    return %arg0, %c0_i32, %c0_i32_0, %c0_i32_1 : i32, i32, i32, i32
  }
  func.func @transform_2(%arg0: i32) -> (i32, i32, i32, i32) {
    %c0_i32 = arith.constant 0 : i32
    %c0_i32_0 = arith.constant 0 : i32
    %c0_i32_1 = arith.constant 0 : i32
    %c0_i32_2 = arith.constant 0 : i32
    return %arg0, %c0_i32, %c0_i32_0, %c0_i32_1 : i32, i32, i32, i32
  }
  func.func @transform_3(%arg0: i32) -> (i32, i32) {
    %c0_i32 = arith.constant 0 : i32
    %c0_i32_0 = arith.constant 0 : i32
    %c0_i32_1 = arith.constant 0 : i32
    return %c0_i32, %c0_i32_0 : i32, i32
  }
  func.func @transform_4(%arg0: i32) -> (i32, i32) {
    %c0_i32 = arith.constant 0 : i32
    %c0_i32_0 = arith.constant 0 : i32
    %c0_i32_1 = arith.constant 0 : i32
    return %c0_i32, %c0_i32_0 : i32, i32
  }
  func.func @transform_5(%arg0: i32) -> (i32, i32) {
    %c0_i32 = arith.constant 0 : i32
    %c0_i32_0 = arith.constant 0 : i32
    %c0_i32_1 = arith.constant 0 : i32
    return %c0_i32, %c0_i32_0 : i32, i32
  }
  func.func @transform_6(%arg0: i32) -> (i32, i32) {
    %c0_i32 = arith.constant 0 : i32
    %c0_i32_0 = arith.constant 0 : i32
    %c0_i32_1 = arith.constant 0 : i32
    return %c0_i32, %c0_i32_0 : i32, i32
  }
  func.func @transform_7(%arg0: i32) -> (i32, i32) {
    %c0_i32 = arith.constant 0 : i32
    %c0_i32_0 = arith.constant 0 : i32
    %c0_i32_1 = arith.constant 0 : i32
    return %c0_i32, %c0_i32_0 : i32, i32
  }
  func.func @transform_8(%arg0: i32) -> (i32, i32, i32) {
    %c0_i32 = arith.constant 0 : i32
    %c0_i32_0 = arith.constant 0 : i32
    %c0_i32_1 = arith.constant 0 : i32
    return %arg0, %c0_i32, %c0_i32_0 : i32, i32, i32
  }
}

</mosaic_0001>

<llo_original>
// kernel: self_attention_pallas.1
$region0: #{self_attention_pallas.1}
  #allocation0 [shape = 'u32[]', space=smem, size = 0x4, offset = 0x4, fixed_abs, tag = 'smem constant byte address 0x4 - core index']
  #allocation1 [shape = 'u32[144,128]{1,0:T(1,128)}', space=vmem, size = 0x12000, scoped, tag = 'internal scratch']
  #allocation2 [shape = 'f32[16,32]{1,0:T(8,128)}', space=vmem, size = 0x2000, scoped, tag = 'scratch operand']
  %s0 = inlined_call_operand.vmem [shape: f32[2,4,8,8], index: 0, kind: input, shape index: {}]
  %s1 = inlined_call_operand.vmem [shape: f32[2,4,8,8], index: 1, kind: input, shape index: {}]
  %s2 = inlined_call_operand.vmem [shape: f32[2,4,8,8], index: 2, kind: input, shape index: {}]
  %s3 = inlined_call_operand.vmem [shape: bf16[8,8], index: 3, kind: input, shape index: {}]
  %s4 = inlined_call_operand.vmem [shape: bf16[8,8], index: 4, kind: input, shape index: {}]
  %s5 = inlined_call_operand.vmem [shape: bf16[8,8], index: 5, kind: input, shape index: {}]
  %s6 = inlined_call_operand.vmem [shape: bf16[32,32], index: 6, kind: input, shape index: {}]
  %s7 = inlined_call_operand.vmem [shape: f32[1,32], index: 7, kind: input, shape index: {}]
  %s8 = inlined_call_operand.hbm [shape: f32[2,8,32], index: 8, kind: output, shape index: {}]
  %s9 = sld [smem:[#allocation0]]
  $region42: #{self_attention_pallas.1} parent=0
    _
  %s11 = ssub.s32 1, %s9
  %s12 = scalar_select 0, %s11, %s9
  $region1: #{self_attention_pallas.1} parent=0
    #allocation3 [shape = 'u8[8192]{0}', space=vmem, size = 0x2000, scoped, tag = 'output window, operand 0, single buffered']
    #allocation4 [shape = 's32[1]{0}', space=sflag, size = 0x4, scoped, tag = 'scoped memory for self_attention_pallas.1']
    %13 = vsyncpa [#allocation4], 0
    // Predicated region
    $region2: #{self_attention_pallas.1} parent=1 // pred_check
      _
    $region3: #{self_attention_pallas.1} parent=1 // pred_check_branch
      %15 = sbr.rel (0) target = $region5
    $region4: #{self_attention_pallas.1} parent=1 // pred_region
      _
    $region5: #{self_attention_pallas.1} parent=1 // pred_fallthru
      _
    // Predicated region
    $region6: #{self_attention_pallas.1} parent=1 // pred_check
      _
    $region7: #{self_attention_pallas.1} parent=1 // pred_check_branch
      %17 = sbr.rel (0) target = $region9
    $region8: #{self_attention_pallas.1} parent=1 // pred_region
      _
    $region9: #{self_attention_pallas.1} parent=1 // pred_fallthru
      _
    // Predicated region
    $region10: #{self_attention_pallas.1} parent=1 // pred_check
      _
    $region11: #{self_attention_pallas.1} parent=1 // pred_check_branch
      %19 = sbr.rel (0) target = $region13
    $region12: #{self_attention_pallas.1} parent=1 // pred_region
      _
    $region13: #{self_attention_pallas.1} parent=1 // pred_fallthru
      _
    // Predicated region
    $region14: #{self_attention_pallas.1} parent=1 // pred_check
      _
    $region15: #{self_attention_pallas.1} parent=1 // pred_check_branch
      %21 = sbr.rel (0) target = $region17
    $region16: #{self_attention_pallas.1} parent=1 // pred_region
      _
    $region17: #{self_attention_pallas.1} parent=1 // pred_fallthru
      _
    // Predicated region
    $region18: #{self_attention_pallas.1} parent=1 // pred_check
      _
    $region19: #{self_attention_pallas.1} parent=1 // pred_check_branch
      %23 = sbr.rel (0) target = $region21
    $region20: #{self_attention_pallas.1} parent=1 // pred_region
      _
    $region21: #{self_attention_pallas.1} parent=1 // pred_fallthru
      _
    // Predicated region
    $region22: #{self_attention_pallas.1} parent=1 // pred_check
      _
    $region23: #{self_attention_pallas.1} parent=1 // pred_check_branch
      %25 = sbr.rel (0) target = $region25
    $region24: #{self_attention_pallas.1} parent=1 // pred_region
      _
    $region25: #{self_attention_pallas.1} parent=1 // pred_fallthru
      _
    // Predicated region
    $region26: #{self_attention_pallas.1} parent=1 // pred_check
      _
    $region27: #{self_attention_pallas.1} parent=1 // pred_check_branch
      %27 = sbr.rel (0) target = $region29
    $region28: #{self_attention_pallas.1} parent=1 // pred_region
      _
    $region29: #{self_attention_pallas.1} parent=1 // pred_fallthru
      _
    // Predicated region
    $region30: #{self_attention_pallas.1} parent=1 // pred_check
      _
    $region31: #{self_attention_pallas.1} parent=1 // pred_check_branch
      %29 = sbr.rel (0) target = $region33
    $region32: #{self_attention_pallas.1} parent=1 // pred_region
      _
    $region33: #{self_attention_pallas.1} parent=1 // pred_fallthru
      _
    %v31 = vld [vmem:[%s0] sm:$0xff]
    %v32 = vld [vmem:[%s0 + $0x8] sm:$0xff]
    %v33 = vld [vmem:[%s0 + $0x10] sm:$0xff]
    %v34 = vld [vmem:[%s0 + $0x18] sm:$0xff]
    %v35 = vld [vmem:[%s0 + $0x20] sm:$0xff]
    %v36 = vld [vmem:[%s0 + $0x28] sm:$0xff]
    %v37 = vld [vmem:[%s0 + $0x30] sm:$0xff]
    %v38 = vld [vmem:[%s0 + $0x38] sm:$0xff]
    %v39 = vpack.c.bf16 %v32, %v31
    %v40 = vpack.c.bf16 %v34, %v33
    %v41 = vpack.c.bf16 %v36, %v35
    %v42 = vpack.c.bf16 %v38, %v37
    %v43 = vld [vmem:[%s1] sm:$0xff]
    %v44 = vld [vmem:[%s1 + $0x8] sm:$0xff]
    %v45 = vld [vmem:[%s1 + $0x10] sm:$0xff]
    %v46 = vld [vmem:[%s1 + $0x18] sm:$0xff]
    %v47 = vld [vmem:[%s1 + $0x20] sm:$0xff]
    %v48 = vld [vmem:[%s1 + $0x28] sm:$0xff]
    %v49 = vld [vmem:[%s1 + $0x30] sm:$0xff]
    %v50 = vld [vmem:[%s1 + $0x38] sm:$0xff]
    %v51 = vpack.c.bf16 %v44, %v43
    %v52 = vpack.c.bf16 %v46, %v45
    %v53 = vpack.c.bf16 %v48, %v47
    %v54 = vpack.c.bf16 %v50, %v49
    %v55 = vld [vmem:[%s2] sm:$0xff]
    %v56 = vld [vmem:[%s2 + $0x8] sm:$0xff]
    %v57 = vld [vmem:[%s2 + $0x10] sm:$0xff]
    %v58 = vld [vmem:[%s2 + $0x18] sm:$0xff]
    %v59 = vld [vmem:[%s2 + $0x20] sm:$0xff]
    %v60 = vld [vmem:[%s2 + $0x28] sm:$0xff]
    %v61 = vld [vmem:[%s2 + $0x30] sm:$0xff]
    %v62 = vld [vmem:[%s2 + $0x38] sm:$0xff]
    %v63 = vpack.c.bf16 %v56, %v55
    %v64 = vpack.c.bf16 %v58, %v57
    %v65 = vpack.c.bf16 %v60, %v59
    %v66 = vpack.c.bf16 %v62, %v61
    %v67 = vld [vmem:[%s3] sm:$0xf]
    %vm68 = vcmask 64512
    %v70 = vsel %vm68, %v39, 0
    %v73 = vsel %vm68, %v40, 0
    %v76 = vsel %vm68, %v41, 0
    %v79 = vsel %vm68, %v42, 0
    %vm81 = vcmask 1043456
    %v83 = vsel %vm81, %v67, 0
    %85 = vmatprep.subr.bf16.mxu0 0
    %86 = vmatpush1.bf16.msra.mxu0 %v83
    %87 = vmatprep.subr.bf16.mxu0 0
    %88 = vmatpush1.bf16.msra.mxu0 0
    %89 = vmatprep.subr.bf16.mxu0 0
    %90 = vmatpush1.bf16.msra.mxu0 0
    %91 = vmatprep.subr.bf16.mxu0 0
    %92 = vmatpush1.bf16.msra.mxu0 0
    %93 = vmatprep.subr.bf16.mxu0 0
    %94 = vmatpush1.bf16.msra.mxu0 0
    %95 = vmatprep.subr.bf16.mxu0 0
    %96 = vmatpush1.bf16.msra.mxu0 0
    %97 = vmatprep.subr.bf16.mxu0 0
    %98 = vmatpush1.bf16.msra.mxu0 0
    %99 = vmatprep.subr.bf16.mxu0 0
    %100 = vmatpush1.bf16.msra.mxu0 0
    %101 = vmatprep.subr.bf16.mxu0 0
    %102 = vmatpush1.bf16.msra.mxu0 0
    %103 = vmatprep.subr.bf16.mxu0 0
    %104 = vmatpush1.bf16.msra.mxu0 0
    %105 = vmatprep.subr.bf16.mxu0 0
    %106 = vmatpush1.bf16.msra.mxu0 0
    %107 = vmatprep.subr.bf16.mxu0 0
    %108 = vmatpush1.bf16.msra.mxu0 0
    %109 = vmatprep.subr.bf16.mxu0 0
    %110 = vmatpush1.bf16.msra.mxu0 0
    %111 = vmatprep.subr.bf16.mxu0 0
    %112 = vmatpush1.bf16.msra.mxu0 0
    %113 = vmatprep.subr.bf16.mxu0 0
    %114 = vmatpush1.bf16.msra.mxu0 0
    %115 = vmatprep.subr.bf16.mxu0 0
    %116 = vmatpush1.bf16.msra.mxu0 0
    %117 = vmatprep.mubr.bf16.mxu0 0
    %118 = vmatmul.mubr.bf16.gmra.mrb[0].mxu0 %v70
    %v119 = vpop.f32.mrb[0].mxu0
    %v120 = vadd.f32 0.0, %v119
    %v121 = vpop.f32.mrb[0].mxu0
    %v122 = vpop.f32.mrb[0].mxu0
    %v123 = vadd.f32 0.0, %v122
    %v124 = vpop.f32.mrb[0].mxu0
    %125 = vmatprep.mubr.bf16.mxu0 0
    %126 = vmatmul.mubr.bf16.gmra.mrb[0].mxu0 %v73
    %v127 = vpop.f32.mrb[0].mxu0
    %v128 = vadd.f32 0.0, %v127
    %v129 = vpop.f32.mrb[0].mxu0
    %v130 = vpop.f32.mrb[0].mxu0
    %v131 = vadd.f32 0.0, %v130
    %v132 = vpop.f32.mrb[0].mxu0
    %133 = vmatprep.mubr.bf16.mxu0 0
    %134 = vmatmul.mubr.bf16.gmra.mrb[0].mxu0 %v76
    %v135 = vpop.f32.mrb[0].mxu0
    %v136 = vadd.f32 0.0, %v135
    %v137 = vpop.f32.mrb[0].mxu0
    %v138 = vpop.f32.mrb[0].mxu0
    %v139 = vadd.f32 0.0, %v138
    %v140 = vpop.f32.mrb[0].mxu0
    %141 = vmatprep.mubr.bf16.mxu0 0
    %142 = vmatmul.mubr.bf16.gmra.mrb[0].mxu0 %v79
    %v143 = vpop.f32.mrb[0].mxu0
    %v144 = vadd.f32 0.0, %v143
    %v145 = vpop.f32.mrb[0].mxu0
    %v146 = vpop.f32.mrb[0].mxu0
    %v147 = vadd.f32 0.0, %v146
    %v148 = vpop.f32.mrb[0].mxu0
    %149 = vdwg.mxu0
    %v150 = vmul.f32 %v120, 0.17677669
    %v151 = vmul.f32 %v123, 0.17677669
    %v152 = vmul.f32 %v128, 0.17677669
    %v153 = vmul.f32 %v131, 0.17677669
    %v154 = vmul.f32 %v136, 0.17677669
    %v155 = vmul.f32 %v139, 0.17677669
    %v156 = vmul.f32 %v144, 0.17677669
    %v157 = vmul.f32 %v147, 0.17677669
    %v158 = vld [vmem:[%s4] sm:$0xf]
    %v160 = vsel %vm68, %v51, 0
    %v163 = vsel %vm68, %v52, 0
    %v166 = vsel %vm68, %v53, 0
    %v169 = vsel %vm68, %v54, 0
    %v172 = vsel %vm81, %v158, 0
    %174 = vmatprep.subr.bf16.mxu0 0
    %175 = vmatpush1.bf16.msra.mxu0 %v172
    %176 = vmatprep.subr.bf16.mxu0 0
    %177 = vmatpush1.bf16.msra.mxu0 0
    %178 = vmatprep.subr.bf16.mxu0 0
    %179 = vmatpush1.bf16.msra.mxu0 0
    %180 = vmatprep.subr.bf16.mxu0 0
    %181 = vmatpush1.bf16.msra.mxu0 0
    %182 = vmatprep.subr.bf16.mxu0 0
    %183 = vmatpush1.bf16.msra.mxu0 0
    %184 = vmatprep.subr.bf16.mxu0 0
    %185 = vmatpush1.bf16.msra.mxu0 0
    %186 = vmatprep.subr.bf16.mxu0 0
    %187 = vmatpush1.bf16.msra.mxu0 0
    %188 = vmatprep.subr.bf16.mxu0 0
    %189 = vmatpush1.bf16.msra.mxu0 0
    %190 = vmatprep.subr.bf16.mxu0 0
    %191 = vmatpush1.bf16.msra.mxu0 0
    %192 = vmatprep.subr.bf16.mxu0 0
    %193 = vmatpush1.bf16.msra.mxu0 0
    %194 = vmatprep.subr.bf16.mxu0 0
    %195 = vmatpush1.bf16.msra.mxu0 0
    %196 = vmatprep.subr.bf16.mxu0 0
    %197 = vmatpush1.bf16.msra.mxu0 0
    %198 = vmatprep.subr.bf16.mxu0 0
    %199 = vmatpush1.bf16.msra.mxu0 0
    %200 = vmatprep.subr.bf16.mxu0 0
    %201 = vmatpush1.bf16.msra.mxu0 0
    %202 = vmatprep.subr.bf16.mxu0 0
    %203 = vmatpush1.bf16.msra.mxu0 0
    %204 = vmatprep.subr.bf16.mxu0 0
    %205 = vmatpush1.bf16.msra.mxu0 0
    %206 = vmatprep.mubr.bf16.mxu0 0
    %207 = vmatmul.mubr.bf16.gmra.mrb[0].mxu0 %v160
    %v208 = vpop.f32.mrb[0].mxu0
    %v209 = vadd.f32 0.0, %v208
    %v210 = vpop.f32.mrb[0].mxu0
    %v211 = vpop.f32.mrb[0].mxu0
    %v212 = vadd.f32 0.0, %v211
    %v213 = vpop.f32.mrb[0].mxu0
    %214 = vmatprep.mubr.bf16.mxu0 0
    %215 = vmatmul.mubr.bf16.gmra.mrb[0].mxu0 %v163
    %v216 = vpop.f32.mrb[0].mxu0
    %v217 = vadd.f32 0.0, %v216
    %v218 = vpop.f32.mrb[0].mxu0
    %v219 = vpop.f32.mrb[0].mxu0
    %v220 = vadd.f32 0.0, %v219
    %v221 = vpop.f32.mrb[0].mxu0
    %222 = vmatprep.mubr.bf16.mxu0 0
    %223 = vmatmul.mubr.bf16.gmra.mrb[0].mxu0 %v166
    %v224 = vpop.f32.mrb[0].mxu0
    %v225 = vadd.f32 0.0, %v224
    %v226 = vpop.f32.mrb[0].mxu0
    %v227 = vpop.f32.mrb[0].mxu0
    %v228 = vadd.f32 0.0, %v227
    %v229 = vpop.f32.mrb[0].mxu0
    %230 = vmatprep.mubr.bf16.mxu0 0
    %231 = vmatmul.mubr.bf16.gmra.mrb[0].mxu0 %v169
    %v232 = vpop.f32.mrb[0].mxu0
    %v233 = vadd.f32 0.0, %v232
    %v234 = vpop.f32.mrb[0].mxu0
    %v235 = vpop.f32.mrb[0].mxu0
    %v236 = vadd.f32 0.0, %v235
    %v237 = vpop.f32.mrb[0].mxu0
    %238 = vdwg.mxu0
    %v239 = vld [vmem:[%s5] sm:$0xf]
    %v241 = vsel %vm68, %v63, 0
    %v244 = vsel %vm68, %v64, 0
    %v247 = vsel %vm68, %v65, 0
    %v250 = vsel %vm68, %v66, 0
    %v253 = vsel %vm81, %v239, 0
    %255 = vmatprep.subr.bf16.mxu0 0
    %256 = vmatpush1.bf16.msra.mxu0 %v253
    %257 = vmatprep.subr.bf16.mxu0 0
    %258 = vmatpush1.bf16.msra.mxu0 0
    %259 = vmatprep.subr.bf16.mxu0 0
    %260 = vmatpush1.bf16.msra.mxu0 0
    %261 = vmatprep.subr.bf16.mxu0 0
    %262 = vmatpush1.bf16.msra.mxu0 0
    %263 = vmatprep.subr.bf16.mxu0 0
    %264 = vmatpush1.bf16.msra.mxu0 0
    %265 = vmatprep.subr.bf16.mxu0 0
    %266 = vmatpush1.bf16.msra.mxu0 0
    %267 = vmatprep.subr.bf16.mxu0 0
    %268 = vmatpush1.bf16.msra.mxu0 0
    %269 = vmatprep.subr.bf16.mxu0 0
    %270 = vmatpush1.bf16.msra.mxu0 0
    %271 = vmatprep.subr.bf16.mxu0 0
    %272 = vmatpush1.bf16.msra.mxu0 0
    %273 = vmatprep.subr.bf16.mxu0 0
    %274 = vmatpush1.bf16.msra.mxu0 0
    %275 = vmatprep.subr.bf16.mxu0 0
    %276 = vmatpush1.bf16.msra.mxu0 0
    %277 = vmatprep.subr.bf16.mxu0 0
    %278 = vmatpush1.bf16.msra.mxu0 0
    %279 = vmatprep.subr.bf16.mxu0 0
    %280 = vmatpush1.bf16.msra.mxu0 0
    %281 = vmatprep.subr.bf16.mxu0 0
    %282 = vmatpush1.bf16.msra.mxu0 0
    %283 = vmatprep.subr.bf16.mxu0 0
    %284 = vmatpush1.bf16.msra.mxu0 0
    %285 = vmatprep.subr.bf16.mxu0 0
    %286 = vmatpush1.bf16.msra.mxu0 0
    %287 = vmatprep.mubr.bf16.mxu0 0
    %288 = vmatmul.mubr.bf16.gmra.mrb[0].mxu0 %v241
    %v289 = vpop.f32.mrb[0].mxu0
    %v290 = vadd.f32 0.0, %v289
    %v291 = vpop.f32.mrb[0].mxu0
    %v292 = vpop.f32.mrb[0].mxu0
    %v293 = vadd.f32 0.0, %v292
    %v294 = vpop.f32.mrb[0].mxu0
    %295 = vmatprep.mubr.bf16.mxu0 0
    %296 = vmatmul.mubr.bf16.gmra.mrb[0].mxu0 %v244
    %v297 = vpop.f32.mrb[0].mxu0
    %v298 = vadd.f32 0.0, %v297
    %v299 = vpop.f32.mrb[0].mxu0
    %v300 = vpop.f32.mrb[0].mxu0
    %v301 = vadd.f32 0.0, %v300
    %v302 = vpop.f32.mrb[0].mxu0
    %303 = vmatprep.mubr.bf16.mxu0 0
    %304 = vmatmul.mubr.bf16.gmra.mrb[0].mxu0 %v247
    %v305 = vpop.f32.mrb[0].mxu0
    %v306 = vadd.f32 0.0, %v305
    %v307 = vpop.f32.mrb[0].mxu0
    %v308 = vpop.f32.mrb[0].mxu0
    %v309 = vadd.f32 0.0, %v308
    %v310 = vpop.f32.mrb[0].mxu0
    %311 = vmatprep.mubr.bf16.mxu0 0
    %312 = vmatmul.mubr.bf16.gmra.mrb[0].mxu0 %v250
    %v313 = vpop.f32.mrb[0].mxu0
    %v314 = vadd.f32 0.0, %v313
    %v315 = vpop.f32.mrb[0].mxu0
    %v316 = vpop.f32.mrb[0].mxu0
    %v317 = vadd.f32 0.0, %v316
    %v318 = vpop.f32.mrb[0].mxu0
    %319 = vdwg.mxu0
    %v320 = vpack.c.bf16 %v150, %v150
    %v321 = vpack.c.bf16 %v151, %v151
    %v322 = vpack.c.bf16 %v152, %v152
    %v323 = vpack.c.bf16 %v153, %v153
    %v324 = vpack.c.bf16 %v154, %v154
    %v325 = vpack.c.bf16 %v155, %v155
    %v326 = vpack.c.bf16 %v156, %v156
    %v327 = vpack.c.bf16 %v157, %v157
    %v328 = vpack.c.bf16 %v209, %v209
    %v329 = vpack.c.bf16 %v212, %v212
    %v330 = vpack.c.bf16 %v217, %v217
    %v331 = vpack.c.bf16 %v220, %v220
    %v332 = vpack.c.bf16 %v225, %v225
    %v333 = vpack.c.bf16 %v228, %v228
    %v334 = vpack.c.bf16 %v233, %v233
    %v335 = vpack.c.bf16 %v236, %v236
    %v336 = vpack.c.bf16 %v290, %v290
    %v337 = vpack.c.bf16 %v293, %v293
    %v338 = vpack.c.bf16 %v298, %v298
    %v339 = vpack.c.bf16 %v301, %v301
    %v340 = vpack.c.bf16 %v306, %v306
    %v341 = vpack.c.bf16 %v309, %v309
    %v342 = vpack.c.bf16 %v314, %v314
    %v343 = vpack.c.bf16 %v317, %v317
    %v345 = vsel %vm68, %v320, 0
    %v348 = vsel %vm68, %v328, 0
    %350 = vmatprep.subr.bf16.mxu0 0
    %351 = vmatpush1.bf16.xpose.msra.mxu0 %v348
    %352 = vmatprep.subr.bf16.mxu0 0
    %353 = vmatpush1.bf16.xpose.msra.mxu0 0
    %354 = vmatprep.subr.bf16.mxu0 0
    %355 = vmatpush1.bf16.xpose.msra.mxu0 0
    %356 = vmatprep.subr.bf16.mxu0 0
    %357 = vmatpush1.bf16.xpose.msra.mxu0 0
    %358 = vmatprep.subr.bf16.mxu0 0
    %359 = vmatpush1.bf16.xpose.msra.mxu0 0
    %360 = vmatprep.subr.bf16.mxu0 0
    %361 = vmatpush1.bf16.xpose.msra.mxu0 0
    %362 = vmatprep.subr.bf16.mxu0 0
    %363 = vmatpush1.bf16.xpose.msra.mxu0 0
    %364 = vmatprep.subr.bf16.mxu0 0
    %365 = vmatpush1.bf16.xpose.msra.mxu0 0
    %366 = vmatprep.subr.bf16.mxu0 0
    %367 = vmatpush1.bf16.xpose.msra.mxu0 0
    %368 = vmatprep.subr.bf16.mxu0 0
    %369 = vmatpush1.bf16.xpose.msra.mxu0 0
    %370 = vmatprep.subr.bf16.mxu0 0
    %371 = vmatpush1.bf16.xpose.msra.mxu0 0
    %372 = vmatprep.subr.bf16.mxu0 0
    %373 = vmatpush1.bf16.xpose.msra.mxu0 0
    %374 = vmatprep.subr.bf16.mxu0 0
    %375 = vmatpush1.bf16.xpose.msra.mxu0 0
    %376 = vmatprep.subr.bf16.mxu0 0
    %377 = vmatpush1.bf16.xpose.msra.mxu0 0
    %378 = vmatprep.subr.bf16.mxu0 0
    %379 = vmatpush1.bf16.xpose.msra.mxu0 0
    %380 = vmatprep.subr.bf16.mxu0 0
    %381 = vmatpush1.bf16.xpose.msra.mxu0 0
    %382 = vmatprep.mubr.bf16.mxu0 0
    %383 = vmatmul.mubr.bf16.gmra.mrb[0].mxu0 %v345
    %v384 = vpop.f32.mrb[0].mxu0
    %v385 = vadd.f32 0.0, %v384
    %v386 = vpop.f32.mrb[0].mxu0
    %v387 = vpop.f32.mrb[0].mxu0
    %v388 = vpop.f32.mrb[0].mxu0
    %389 = vdwg.mxu0
    %v391 = vsel %vm68, %v321, 0
    %v394 = vsel %vm68, %v329, 0
    %396 = vmatprep.subr.bf16.mxu0 0
    %397 = vmatpush1.bf16.xpose.msra.mxu0 %v394
    %398 = vmatprep.subr.bf16.mxu0 0
    %399 = vmatpush1.bf16.xpose.msra.mxu0 0
    %400 = vmatprep.subr.bf16.mxu0 0
    %401 = vmatpush1.bf16.xpose.msra.mxu0 0
    %402 = vmatprep.subr.bf16.mxu0 0
    %403 = vmatpush1.bf16.xpose.msra.mxu0 0
    %404 = vmatprep.subr.bf16.mxu0 0
    %405 = vmatpush1.bf16.xpose.msra.mxu0 0
    %406 = vmatprep.subr.bf16.mxu0 0
    %407 = vmatpush1.bf16.xpose.msra.mxu0 0
    %408 = vmatprep.subr.bf16.mxu0 0
    %409 = vmatpush1.bf16.xpose.msra.mxu0 0
    %410 = vmatprep.subr.bf16.mxu0 0
    %411 = vmatpush1.bf16.xpose.msra.mxu0 0
    %412 = vmatprep.subr.bf16.mxu0 0
    %413 = vmatpush1.bf16.xpose.msra.mxu0 0
    %414 = vmatprep.subr.bf16.mxu0 0
    %415 = vmatpush1.bf16.xpose.msra.mxu0 0
    %416 = vmatprep.subr.bf16.mxu0 0
    %417 = vmatpush1.bf16.xpose.msra.mxu0 0
    %418 = vmatprep.subr.bf16.mxu0 0
    %419 = vmatpush1.bf16.xpose.msra.mxu0 0
    %420 = vmatprep.subr.bf16.mxu0 0
    %421 = vmatpush1.bf16.xpose.msra.mxu0 0
    %422 = vmatprep.subr.bf16.mxu0 0
    %423 = vmatpush1.bf16.xpose.msra.mxu0 0
    %424 = vmatprep.subr.bf16.mxu0 0
    %425 = vmatpush1.bf16.xpose.msra.mxu0 0
    %426 = vmatprep.subr.bf16.mxu0 0
    %427 = vmatpush1.bf16.xpose.msra.mxu0 0
    %428 = vmatprep.mubr.bf16.mxu0 0
    %429 = vmatmul.mubr.bf16.gmra.mrb[0].mxu0 %v391
    %v430 = vpop.f32.mrb[0].mxu0
    %v431 = vadd.f32 0.0, %v430
    %v432 = vpop.f32.mrb[0].mxu0
    %v433 = vpop.f32.mrb[0].mxu0
    %v434 = vpop.f32.mrb[0].mxu0
    %435 = vdwg.mxu0
    %v437 = vsel %vm68, %v322, 0
    %v440 = vsel %vm68, %v330, 0
    %442 = vmatprep.subr.bf16.mxu0 0
    %443 = vmatpush1.bf16.xpose.msra.mxu0 %v440
    %444 = vmatprep.subr.bf16.mxu0 0
    %445 = vmatpush1.bf16.xpose.msra.mxu0 0
    %446 = vmatprep.subr.bf16.mxu0 0
    %447 = vmatpush1.bf16.xpose.msra.mxu0 0
    %448 = vmatprep.subr.bf16.mxu0 0
    %449 = vmatpush1.bf16.xpose.msra.mxu0 0
    %450 = vmatprep.subr.bf16.mxu0 0
    %451 = vmatpush1.bf16.xpose.msra.mxu0 0
    %452 = vmatprep.subr.bf16.mxu0 0
    %453 = vmatpush1.bf16.xpose.msra.mxu0 0
    %454 = vmatprep.subr.bf16.mxu0 0
    %455 = vmatpush1.bf16.xpose.msra.mxu0 0
    %456 = vmatprep.subr.bf16.mxu0 0
    %457 = vmatpush1.bf16.xpose.msra.mxu0 0
    %458 = vmatprep.subr.bf16.mxu0 0
    %459 = vmatpush1.bf16.xpose.msra.mxu0 0
    %460 = vmatprep.subr.bf16.mxu0 0
    %461 = vmatpush1.bf16.xpose.msra.mxu0 0
    %462 = vmatprep.subr.bf16.mxu0 0
    %463 = vmatpush1.bf16.xpose.msra.mxu0 0
    %464 = vmatprep.subr.bf16.mxu0 0
    %465 = vmatpush1.bf16.xpose.msra.mxu0 0
    %466 = vmatprep.subr.bf16.mxu0 0
    %467 = vmatpush1.bf16.xpose.msra.mxu0 0
    %468 = vmatprep.subr.bf16.mxu0 0
    %469 = vmatpush1.bf16.xpose.msra.mxu0 0
    %470 = vmatprep.subr.bf16.mxu0 0
    %471 = vmatpush1.bf16.xpose.msra.mxu0 0
    %472 = vmatprep.subr.bf16.mxu0 0
    %473 = vmatpush1.bf16.xpose.msra.mxu0 0
    %474 = vmatprep.mubr.bf16.mxu0 0
    %475 = vmatmul.mubr.bf16.gmra.mrb[0].mxu0 %v437
    %v476 = vpop.f32.mrb[0].mxu0
    %v477 = vadd.f32 0.0, %v476
    %v478 = vpop.f32.mrb[0].mxu0
    %v479 = vpop.f32.mrb[0].mxu0
    %v480 = vpop.f32.mrb[0].mxu0
    %481 = vdwg.mxu0
    %v483 = vsel %vm68, %v323, 0
    %v486 = vsel %vm68, %v331, 0
    %488 = vmatprep.subr.bf16.mxu0 0
    %489 = vmatpush1.bf16.xpose.msra.mxu0 %v486
    %490 = vmatprep.subr.bf16.mxu0 0
    %491 = vmatpush1.bf16.xpose.msra.mxu0 0
    %492 = vmatprep.subr.bf16.mxu0 0
    %493 = vmatpush1.bf16.xpose.msra.mxu0 0
    %494 = vmatprep.subr.bf16.mxu0 0
    %495 = vmatpush1.bf16.xpose.msra.mxu0 0
    %496 = vmatprep.subr.bf16.mxu0 0
    %497 = vmatpush1.bf16.xpose.msra.mxu0 0
    %498 = vmatprep.subr.bf16.mxu0 0
    %499 = vmatpush1.bf16.xpose.msra.mxu0 0
    %500 = vmatprep.subr.bf16.mxu0 0
    %501 = vmatpush1.bf16.xpose.msra.mxu0 0
    %502 = vmatprep.subr.bf16.mxu0 0
    %503 = vmatpush1.bf16.xpose.msra.mxu0 0
    %504 = vmatprep.subr.bf16.mxu0 0
    %505 = vmatpush1.bf16.xpose.msra.mxu0 0
    %506 = vmatprep.subr.bf16.mxu0 0
    %507 = vmatpush1.bf16.xpose.msra.mxu0 0
    %508 = vmatprep.subr.bf16.mxu0 0
    %509 = vmatpush1.bf16.xpose.msra.mxu0 0
    %510 = vmatprep.subr.bf16.mxu0 0
    %511 = vmatpush1.bf16.xpose.msra.mxu0 0
    %512 = vmatprep.subr.bf16.mxu0 0
    %513 = vmatpush1.bf16.xpose.msra.mxu0 0
    %514 = vmatprep.subr.bf16.mxu0 0
    %515 = vmatpush1.bf16.xpose.msra.mxu0 0
    %516 = vmatprep.subr.bf16.mxu0 0
    %517 = vmatpush1.bf16.xpose.msra.mxu0 0
    %518 = vmatprep.subr.bf16.mxu0 0
    %519 = vmatpush1.bf16.xpose.msra.mxu0 0
    %520 = vmatprep.mubr.bf16.mxu0 0
    %521 = vmatmul.mubr.bf16.gmra.mrb[0].mxu0 %v483
    %v522 = vpop.f32.mrb[0].mxu0
    %v523 = vadd.f32 0.0, %v522
    %v524 = vpop.f32.mrb[0].mxu0
    %v525 = vpop.f32.mrb[0].mxu0
    %v526 = vpop.f32.mrb[0].mxu0
    %527 = vdwg.mxu0
    %v529 = vsel %vm68, %v324, 0
    %v532 = vsel %vm68, %v332, 0
    %534 = vmatprep.subr.bf16.mxu0 0
    %535 = vmatpush1.bf16.xpose.msra.mxu0 %v532
    %536 = vmatprep.subr.bf16.mxu0 0
    %537 = vmatpush1.bf16.xpose.msra.mxu0 0
    %538 = vmatprep.subr.bf16.mxu0 0
    %539 = vmatpush1.bf16.xpose.msra.mxu0 0
    %540 = vmatprep.subr.bf16.mxu0 0
    %541 = vmatpush1.bf16.xpose.msra.mxu0 0
    %542 = vmatprep.subr.bf16.mxu0 0
    %543 = vmatpush1.bf16.xpose.msra.mxu0 0
    %544 = vmatprep.subr.bf16.mxu0 0
    %545 = vmatpush1.bf16.xpose.msra.mxu0 0
    %546 = vmatprep.subr.bf16.mxu0 0
    %547 = vmatpush1.bf16.xpose.msra.mxu0 0
    %548 = vmatprep.subr.bf16.mxu0 0
    %549 = vmatpush1.bf16.xpose.msra.mxu0 0
    %550 = vmatprep.subr.bf16.mxu0 0
    %551 = vmatpush1.bf16.xpose.msra.mxu0 0
    %552 = vmatprep.subr.bf16.mxu0 0
    %553 = vmatpush1.bf16.xpose.msra.mxu0 0
    %554 = vmatprep.subr.bf16.mxu0 0
    %555 = vmatpush1.bf16.xpose.msra.mxu0 0
    %556 = vmatprep.subr.bf16.mxu0 0
    %557 = vmatpush1.bf16.xpose.msra.mxu0 0
    %558 = vmatprep.subr.bf16.mxu0 0
    %559 = vmatpush1.bf16.xpose.msra.mxu0 0
    %560 = vmatprep.subr.bf16.mxu0 0
    %561 = vmatpush1.bf16.xpose.msra.mxu0 0
    %562 = vmatprep.subr.bf16.mxu0 0
    %563 = vmatpush1.bf16.xpose.msra.mxu0 0
    %564 = vmatprep.subr.bf16.mxu0 0
    %565 = vmatpush1.bf16.xpose.msra.mxu0 0
    %566 = vmatprep.mubr.bf16.mxu0 0
    %567 = vmatmul.mubr.bf16.gmra.mrb[0].mxu0 %v529
    %v568 = vpop.f32.mrb[0].mxu0
    %v569 = vadd.f32 0.0, %v568
    %v570 = vpop.f32.mrb[0].mxu0
    %v571 = vpop.f32.mrb[0].mxu0
    %v572 = vpop.f32.mrb[0].mxu0
    %573 = vdwg.mxu0
    %v575 = vsel %vm68, %v325, 0
    %v578 = vsel %vm68, %v333, 0
    %580 = vmatprep.subr.bf16.mxu0 0
    %581 = vmatpush1.bf16.xpose.msra.mxu0 %v578
    %582 = vmatprep.subr.bf16.mxu0 0
    %583 = vmatpush1.bf16.xpose.msra.mxu0 0
    %584 = vmatprep.subr.bf16.mxu0 0
    %585 = vmatpush1.bf16.xpose.msra.mxu0 0
    %586 = vmatprep.subr.bf16.mxu0 0
    %587 = vmatpush1.bf16.xpose.msra.mxu0 0
    %588 = vmatprep.subr.bf16.mxu0 0
    %589 = vmatpush1.bf16.xpose.msra.mxu0 0
    %590 = vmatprep.subr.bf16.mxu0 0
    %591 = vmatpush1.bf16.xpose.msra.mxu0 0
    %592 = vmatprep.subr.bf16.mxu0 0
    %593 = vmatpush1.bf16.xpose.msra.mxu0 0
    %594 = vmatprep.subr.bf16.mxu0 0
    %595 = vmatpush1.bf16.xpose.msra.mxu0 0
    %596 = vmatprep.subr.bf16.mxu0 0
    %597 = vmatpush1.bf16.xpose.msra.mxu0 0
    %598 = vmatprep.subr.bf16.mxu0 0
    %599 = vmatpush1.bf16.xpose.msra.mxu0 0
    %600 = vmatprep.subr.bf16.mxu0 0
    %601 = vmatpush1.bf16.xpose.msra.mxu0 0
    %602 = vmatprep.subr.bf16.mxu0 0
    %603 = vmatpush1.bf16.xpose.msra.mxu0 0
    %604 = vmatprep.subr.bf16.mxu0 0
    %605 = vmatpush1.bf16.xpose.msra.mxu0 0
    %606 = vmatprep.subr.bf16.mxu0 0
    %607 = vmatpush1.bf16.xpose.msra.mxu0 0
    %608 = vmatprep.subr.bf16.mxu0 0
    %609 = vmatpush1.bf16.xpose.msra.mxu0 0
    %610 = vmatprep.subr.bf16.mxu0 0
    %611 = vmatpush1.bf16.xpose.msra.mxu0 0
    %612 = vmatprep.mubr.bf16.mxu0 0
    %613 = vmatmul.mubr.bf16.gmra.mrb[0].mxu0 %v575
    %v614 = vpop.f32.mrb[0].mxu0
    %v615 = vadd.f32 0.0, %v614
    %v616 = vpop.f32.mrb[0].mxu0
    %v617 = vpop.f32.mrb[0].mxu0
    %v618 = vpop.f32.mrb[0].mxu0
    %619 = vdwg.mxu0
    %v621 = vsel %vm68, %v326, 0
    %v624 = vsel %vm68, %v334, 0
    %626 = vmatprep.subr.bf16.mxu0 0
    %627 = vmatpush1.bf16.xpose.msra.mxu0 %v624
    %628 = vmatprep.subr.bf16.mxu0 0
    %629 = vmatpush1.bf16.xpose.msra.mxu0 0
    %630 = vmatprep.subr.bf16.mxu0 0
    %631 = vmatpush1.bf16.xpose.msra.mxu0 0
    %632 = vmatprep.subr.bf16.mxu0 0
    %633 = vmatpush1.bf16.xpose.msra.mxu0 0
    %634 = vmatprep.subr.bf16.mxu0 0
    %635 = vmatpush1.bf16.xpose.msra.mxu0 0
    %636 = vmatprep.subr.bf16.mxu0 0
    %637 = vmatpush1.bf16.xpose.msra.mxu0 0
    %638 = vmatprep.subr.bf16.mxu0 0
    %639 = vmatpush1.bf16.xpose.msra.mxu0 0
    %640 = vmatprep.subr.bf16.mxu0 0
    %641 = vmatpush1.bf16.xpose.msra.mxu0 0
    %642 = vmatprep.subr.bf16.mxu0 0
    %643 = vmatpush1.bf16.xpose.msra.mxu0 0
    %644 = vmatprep.subr.bf16.mxu0 0
    %645 = vmatpush1.bf16.xpose.msra.mxu0 0
    %646 = vmatprep.subr.bf16.mxu0 0
    %647 = vmatpush1.bf16.xpose.msra.mxu0 0
    %648 = vmatprep.subr.bf16.mxu0 0
    %649 = vmatpush1.bf16.xpose.msra.mxu0 0
    %650 = vmatprep.subr.bf16.mxu0 0
    %651 = vmatpush1.bf16.xpose.msra.mxu0 0
    %652 = vmatprep.subr.bf16.mxu0 0
    %653 = vmatpush1.bf16.xpose.msra.mxu0 0
    %654 = vmatprep.subr.bf16.mxu0 0
    %655 = vmatpush1.bf16.xpose.msra.mxu0 0
    %656 = vmatprep.subr.bf16.mxu0 0
    %657 = vmatpush1.bf16.xpose.msra.mxu0 0
    %658 = vmatprep.mubr.bf16.mxu0 0
    %659 = vmatmul.mubr.bf16.gmra.mrb[0].mxu0 %v621
    %v660 = vpop.f32.mrb[0].mxu0
    %v661 = vadd.f32 0.0, %v660
    %v662 = vpop.f32.mrb[0].mxu0
    %v663 = vpop.f32.mrb[0].mxu0
    %v664 = vpop.f32.mrb[0].mxu0
    %665 = vdwg.mxu0
    %v667 = vsel %vm68, %v327, 0
    %v670 = vsel %vm68, %v335, 0
    %672 = vmatprep.subr.bf16.mxu0 0
    %673 = vmatpush1.bf16.xpose.msra.mxu0 %v670
    %674 = vmatprep.subr.bf16.mxu0 0
    %675 = vmatpush1.bf16.xpose.msra.mxu0 0
    %676 = vmatprep.subr.bf16.mxu0 0
    %677 = vmatpush1.bf16.xpose.msra.mxu0 0
    %678 = vmatprep.subr.bf16.mxu0 0
    %679 = vmatpush1.bf16.xpose.msra.mxu0 0
    %680 = vmatprep.subr.bf16.mxu0 0
    %681 = vmatpush1.bf16.xpose.msra.mxu0 0
    %682 = vmatprep.subr.bf16.mxu0 0
    %683 = vmatpush1.bf16.xpose.msra.mxu0 0
    %684 = vmatprep.subr.bf16.mxu0 0
    %685 = vmatpush1.bf16.xpose.msra.mxu0 0
    %686 = vmatprep.subr.bf16.mxu0 0
    %687 = vmatpush1.bf16.xpose.msra.mxu0 0
    %688 = vmatprep.subr.bf16.mxu0 0
    %689 = vmatpush1.bf16.xpose.msra.mxu0 0
    %690 = vmatprep.subr.bf16.mxu0 0
    %691 = vmatpush1.bf16.xpose.msra.mxu0 0
    %692 = vmatprep.subr.bf16.mxu0 0
    %693 = vmatpush1.bf16.xpose.msra.mxu0 0
    %694 = vmatprep.subr.bf16.mxu0 0
    %695 = vmatpush1.bf16.xpose.msra.mxu0 0
    %696 = vmatprep.subr.bf16.mxu0 0
    %697 = vmatpush1.bf16.xpose.msra.mxu0 0
    %698 = vmatprep.subr.bf16.mxu0 0
    %699 = vmatpush1.bf16.xpose.msra.mxu0 0
    %700 = vmatprep.subr.bf16.mxu0 0
    %701 = vmatpush1.bf16.xpose.msra.mxu0 0
    %702 = vmatprep.subr.bf16.mxu0 0
    %703 = vmatpush1.bf16.xpose.msra.mxu0 0
    %704 = vmatprep.mubr.bf16.mxu0 0
    %705 = vmatmul.mubr.bf16.gmra.mrb[0].mxu0 %v667
    %v706 = vpop.f32.mrb[0].mxu0
    %v707 = vadd.f32 0.0, %v706
    %v708 = vpop.f32.mrb[0].mxu0
    %v709 = vpop.f32.mrb[0].mxu0
    %v710 = vpop.f32.mrb[0].mxu0
    %711 = vdwg.mxu0
    %v712 = vsel %vm68, %v385, -inf
    %713 = vmax.xlane.f32.xlu0 %v712
    %v714 = vpop.xlane.xlu0 %713
    %v715 = vsel %vm68, %v431, -inf
    %716 = vmax.xlane.f32.xlu0 %v715
    %v717 = vpop.xlane.xlu0 %716
    %v718 = vsel %vm68, %v477, -inf
    %719 = vmax.xlane.f32.xlu0 %v718
    %v720 = vpop.xlane.xlu0 %719
    %v721 = vsel %vm68, %v523, -inf
    %722 = vmax.xlane.f32.xlu0 %v721
    %v723 = vpop.xlane.xlu0 %722
    %v724 = vsel %vm68, %v569, -inf
    %725 = vmax.xlane.f32.xlu0 %v724
    %v726 = vpop.xlane.xlu0 %725
    %v727 = vsel %vm68, %v615, -inf
    %728 = vmax.xlane.f32.xlu0 %v727
    %v729 = vpop.xlane.xlu0 %728
    %v730 = vsel %vm68, %v661, -inf
    %731 = vmax.xlane.f32.xlu0 %v730
    %v732 = vpop.xlane.xlu0 %731
    %v733 = vsel %vm68, %v707, -inf
    %734 = vmax.xlane.f32.xlu0 %v733
    %v735 = vpop.xlane.xlu0 %734
    %v736 = vsub.f32 %v385, %v714
    %v737 = vsub.f32 %v431, %v717
    %v738 = vsub.f32 %v477, %v720
    %v739 = vsub.f32 %v523, %v723
    %v740 = vsub.f32 %v569, %v726
    %v741 = vsub.f32 %v615, %v729
    %v742 = vsub.f32 %v661, %v732
    %v743 = vsub.f32 %v707, %v735
    %v744 = vmul.f32 %v736, 1.442695
    %v745 = vpow.pop %v744
    %v746 = vmul.f32 %v737, 1.442695
    %v747 = vpow.pop %v746
    %v748 = vmul.f32 %v738, 1.442695
    %v749 = vpow.pop %v748
    %v750 = vmul.f32 %v739, 1.442695
    %v751 = vpow.pop %v750
    %v752 = vmul.f32 %v740, 1.442695
    %v753 = vpow.pop %v752
    %v754 = vmul.f32 %v741, 1.442695
    %v755 = vpow.pop %v754
    %v756 = vmul.f32 %v742, 1.442695
    %v757 = vpow.pop %v756
    %v758 = vmul.f32 %v743, 1.442695
    %v759 = vpow.pop %v758
    %v760 = vsel %vm68, %v745, 0.0
    %761 = vadd.xlane.f32.xlu0 %v760
    %v762 = vpop.xlane.xlu0 %761
    %v763 = vsel %vm68, %v747, 0.0
    %764 = vadd.xlane.f32.xlu0 %v763
    %v765 = vpop.xlane.xlu0 %764
    %v766 = vsel %vm68, %v749, 0.0
    %767 = vadd.xlane.f32.xlu0 %v766
    %v768 = vpop.xlane.xlu0 %767
    %v769 = vsel %vm68, %v751, 0.0
    %770 = vadd.xlane.f32.xlu0 %v769
    %v771 = vpop.xlane.xlu0 %770
    %v772 = vsel %vm68, %v753, 0.0
    %773 = vadd.xlane.f32.xlu0 %v772
    %v774 = vpop.xlane.xlu0 %773
    %v775 = vsel %vm68, %v755, 0.0
    %776 = vadd.xlane.f32.xlu0 %v775
    %v777 = vpop.xlane.xlu0 %776
    %v778 = vsel %vm68, %v757, 0.0
    %779 = vadd.xlane.f32.xlu0 %v778
    %v780 = vpop.xlane.xlu0 %779
    %v781 = vsel %vm68, %v759, 0.0
    %782 = vadd.xlane.f32.xlu0 %v781
    %v783 = vpop.xlane.xlu0 %782
    %v784 = vrcp.pop %v762
    %v785 = vrcp.pop %v765
    %v786 = vrcp.pop %v768
    %v787 = vrcp.pop %v771
    %v788 = vrcp.pop %v774
    %v789 = vrcp.pop %v777
    %v790 = vrcp.pop %v780
    %v791 = vrcp.pop %v783
    %v792 = vmul.f32 %v745, %v784
    %v793 = vmul.f32 %v747, %v785
    %v794 = vmul.f32 %v749, %v786
    %v795 = vmul.f32 %v751, %v787
    %v796 = vmul.f32 %v753, %v788
    %v797 = vmul.f32 %v755, %v789
    %v798 = vmul.f32 %v757, %v790
    %v799 = vmul.f32 %v759, %v791
    %v800 = vpack.c.bf16 %v792, %v792
    %v801 = vpack.c.bf16 %v793, %v793
    %v802 = vpack.c.bf16 %v794, %v794
    %v803 = vpack.c.bf16 %v795, %v795
    %v804 = vpack.c.bf16 %v796, %v796
    %v805 = vpack.c.bf16 %v797, %v797
    %v806 = vpack.c.bf16 %v798, %v798
    %v807 = vpack.c.bf16 %v799, %v799
    %v809 = vsel %vm68, %v800, 0
    %v812 = vsel %vm81, %v336, 0
    %814 = vmatprep.subr.bf16.mxu0 0
    %815 = vmatpush1.bf16.msra.mxu0 %v812
    %816 = vmatprep.subr.bf16.mxu0 0
    %817 = vmatpush1.bf16.msra.mxu0 0
    %818 = vmatprep.subr.bf16.mxu0 0
    %819 = vmatpush1.bf16.msra.mxu0 0
    %820 = vmatprep.subr.bf16.mxu0 0
    %821 = vmatpush1.bf16.msra.mxu0 0
    %822 = vmatprep.subr.bf16.mxu0 0
    %823 = vmatpush1.bf16.msra.mxu0 0
    %824 = vmatprep.subr.bf16.mxu0 0
    %825 = vmatpush1.bf16.msra.mxu0 0
    %826 = vmatprep.subr.bf16.mxu0 0
    %827 = vmatpush1.bf16.msra.mxu0 0
    %828 = vmatprep.subr.bf16.mxu0 0
    %829 = vmatpush1.bf16.msra.mxu0 0
    %830 = vmatprep.subr.bf16.mxu0 0
    %831 = vmatpush1.bf16.msra.mxu0 0
    %832 = vmatprep.subr.bf16.mxu0 0
    %833 = vmatpush1.bf16.msra.mxu0 0
    %834 = vmatprep.subr.bf16.mxu0 0
    %835 = vmatpush1.bf16.msra.mxu0 0
    %836 = vmatprep.subr.bf16.mxu0 0
    %837 = vmatpush1.bf16.msra.mxu0 0
    %838 = vmatprep.subr.bf16.mxu0 0
    %839 = vmatpush1.bf16.msra.mxu0 0
    %840 = vmatprep.subr.bf16.mxu0 0
    %841 = vmatpush1.bf16.msra.mxu0 0
    %842 = vmatprep.subr.bf16.mxu0 0
    %843 = vmatpush1.bf16.msra.mxu0 0
    %844 = vmatprep.subr.bf16.mxu0 0
    %845 = vmatpush1.bf16.msra.mxu0 0
    %846 = vmatprep.mubr.bf16.mxu0 0
    %847 = vmatmul.mubr.bf16.gmra.mrb[0].mxu0 %v809
    %v848 = vpop.f32.mrb[0].mxu0
    %v849 = vadd.f32 0.0, %v848
    %v850 = vpop.f32.mrb[0].mxu0
    %v851 = vpop.f32.mrb[0].mxu0
    %v852 = vpop.f32.mrb[0].mxu0
    %853 = vdwg.mxu0
    %v855 = vsel %vm68, %v801, 0
    %v858 = vsel %vm81, %v337, 0
    %860 = vmatprep.subr.bf16.mxu0 0
    %861 = vmatpush1.bf16.msra.mxu0 %v858
    %862 = vmatprep.subr.bf16.mxu0 0
    %863 = vmatpush1.bf16.msra.mxu0 0
    %864 = vmatprep.subr.bf16.mxu0 0
    %865 = vmatpush1.bf16.msra.mxu0 0
    %866 = vmatprep.subr.bf16.mxu0 0
    %867 = vmatpush1.bf16.msra.mxu0 0
    %868 = vmatprep.subr.bf16.mxu0 0
    %869 = vmatpush1.bf16.msra.mxu0 0
    %870 = vmatprep.subr.bf16.mxu0 0
    %871 = vmatpush1.bf16.msra.mxu0 0
    %872 = vmatprep.subr.bf16.mxu0 0
    %873 = vmatpush1.bf16.msra.mxu0 0
    %874 = vmatprep.subr.bf16.mxu0 0
    %875 = vmatpush1.bf16.msra.mxu0 0
    %876 = vmatprep.subr.bf16.mxu0 0
    %877 = vmatpush1.bf16.msra.mxu0 0
    %878 = vmatprep.subr.bf16.mxu0 0
    %879 = vmatpush1.bf16.msra.mxu0 0
    %880 = vmatprep.subr.bf16.mxu0 0
    %881 = vmatpush1.bf16.msra.mxu0 0
    %882 = vmatprep.subr.bf16.mxu0 0
    %883 = vmatpush1.bf16.msra.mxu0 0
    %884 = vmatprep.subr.bf16.mxu0 0
    %885 = vmatpush1.bf16.msra.mxu0 0
    %886 = vmatprep.subr.bf16.mxu0 0
    %887 = vmatpush1.bf16.msra.mxu0 0
    %888 = vmatprep.subr.bf16.mxu0 0
    %889 = vmatpush1.bf16.msra.mxu0 0
    %890 = vmatprep.subr.bf16.mxu0 0
    %891 = vmatpush1.bf16.msra.mxu0 0
    %892 = vmatprep.mubr.bf16.mxu0 0
    %893 = vmatmul.mubr.bf16.gmra.mrb[0].mxu0 %v855
    %v894 = vpop.f32.mrb[0].mxu0
    %v895 = vadd.f32 0.0, %v894
    %v896 = vpop.f32.mrb[0].mxu0
    %v897 = vpop.f32.mrb[0].mxu0
    %v898 = vpop.f32.mrb[0].mxu0
    %899 = vdwg.mxu0
    %v901 = vsel %vm68, %v802, 0
    %v904 = vsel %vm81, %v338, 0
    %906 = vmatprep.subr.bf16.mxu0 0
    %907 = vmatpush1.bf16.msra.mxu0 %v904
    %908 = vmatprep.subr.bf16.mxu0 0
    %909 = vmatpush1.bf16.msra.mxu0 0
    %910 = vmatprep.subr.bf16.mxu0 0
    %911 = vmatpush1.bf16.msra.mxu0 0
    %912 = vmatprep.subr.bf16.mxu0 0
    %913 = vmatpush1.bf16.msra.mxu0 0
    %914 = vmatprep.subr.bf16.mxu0 0
    %915 = vmatpush1.bf16.msra.mxu0 0
    %916 = vmatprep.subr.bf16.mxu0 0
    %917 = vmatpush1.bf16.msra.mxu0 0
    %918 = vmatprep.subr.bf16.mxu0 0
    %919 = vmatpush1.bf16.msra.mxu0 0
    %920 = vmatprep.subr.bf16.mxu0 0
    %921 = vmatpush1.bf16.msra.mxu0 0
    %922 = vmatprep.subr.bf16.mxu0 0
    %923 = vmatpush1.bf16.msra.mxu0 0
    %924 = vmatprep.subr.bf16.mxu0 0
    %925 = vmatpush1.bf16.msra.mxu0 0
    %926 = vmatprep.subr.bf16.mxu0 0
    %927 = vmatpush1.bf16.msra.mxu0 0
    %928 = vmatprep.subr.bf16.mxu0 0
    %929 = vmatpush1.bf16.msra.mxu0 0
    %930 = vmatprep.subr.bf16.mxu0 0
    %931 = vmatpush1.bf16.msra.mxu0 0
    %932 = vmatprep.subr.bf16.mxu0 0
    %933 = vmatpush1.bf16.msra.mxu0 0
    %934 = vmatprep.subr.bf16.mxu0 0
    %935 = vmatpush1.bf16.msra.mxu0 0
    %936 = vmatprep.subr.bf16.mxu0 0
    %937 = vmatpush1.bf16.msra.mxu0 0
    %938 = vmatprep.mubr.bf16.mxu0 0
    %939 = vmatmul.mubr.bf16.gmra.mrb[0].mxu0 %v901
    %v940 = vpop.f32.mrb[0].mxu0
    %v941 = vadd.f32 0.0, %v940
    %v942 = vpop.f32.mrb[0].mxu0
    %v943 = vpop.f32.mrb[0].mxu0
    %v944 = vpop.f32.mrb[0].mxu0
    %945 = vdwg.mxu0
    %v947 = vsel %vm68, %v803, 0
    %v950 = vsel %vm81, %v339, 0
    %952 = vmatprep.subr.bf16.mxu0 0
    %953 = vmatpush1.bf16.msra.mxu0 %v950
    %954 = vmatprep.subr.bf16.mxu0 0
    %955 = vmatpush1.bf16.msra.mxu0 0
    %956 = vmatprep.subr.bf16.mxu0 0
    %957 = vmatpush1.bf16.msra.mxu0 0
    %958 = vmatprep.subr.bf16.mxu0 0
    %959 = vmatpush1.bf16.msra.mxu0 0
    %960 = vmatprep.subr.bf16.mxu0 0
    %961 = vmatpush1.bf16.msra.mxu0 0
    %962 = vmatprep.subr.bf16.mxu0 0
    %963 = vmatpush1.bf16.msra.mxu0 0
    %964 = vmatprep.subr.bf16.mxu0 0
    %965 = vmatpush1.bf16.msra.mxu0 0
    %966 = vmatprep.subr.bf16.mxu0 0
    %967 = vmatpush1.bf16.msra.mxu0 0
    %968 = vmatprep.subr.bf16.mxu0 0
    %969 = vmatpush1.bf16.msra.mxu0 0
    %970 = vmatprep.subr.bf16.mxu0 0
    %971 = vmatpush1.bf16.msra.mxu0 0
    %972 = vmatprep.subr.bf16.mxu0 0
    %973 = vmatpush1.bf16.msra.mxu0 0
    %974 = vmatprep.subr.bf16.mxu0 0
    %975 = vmatpush1.bf16.msra.mxu0 0
    %976 = vmatprep.subr.bf16.mxu0 0
    %977 = vmatpush1.bf16.msra.mxu0 0
    %978 = vmatprep.subr.bf16.mxu0 0
    %979 = vmatpush1.bf16.msra.mxu0 0
    %980 = vmatprep.subr.bf16.mxu0 0
    %981 = vmatpush1.bf16.msra.mxu0 0
    %982 = vmatprep.subr.bf16.mxu0 0
    %983 = vmatpush1.bf16.msra.mxu0 0
    %984 = vmatprep.mubr.bf16.mxu0 0
    %985 = vmatmul.mubr.bf16.gmra.mrb[0].mxu0 %v947
    %v986 = vpop.f32.mrb[0].mxu0
    %v987 = vadd.f32 0.0, %v986
    %v988 = vpop.f32.mrb[0].mxu0
    %v989 = vpop.f32.mrb[0].mxu0
    %v990 = vpop.f32.mrb[0].mxu0
    %991 = vdwg.mxu0
    %v993 = vsel %vm68, %v804, 0
    %v996 = vsel %vm81, %v340, 0
    %998 = vmatprep.subr.bf16.mxu0 0
    %999 = vmatpush1.bf16.msra.mxu0 %v996
    %1000 = vmatprep.subr.bf16.mxu0 0
    %1001 = vmatpush1.bf16.msra.mxu0 0
    %1002 = vmatprep.subr.bf16.mxu0 0
    %1003 = vmatpush1.bf16.msra.mxu0 0
    %1004 = vmatprep.subr.bf16.mxu0 0
    %1005 = vmatpush1.bf16.msra.mxu0 0
    %1006 = vmatprep.subr.bf16.mxu0 0
    %1007 = vmatpush1.bf16.msra.mxu0 0
    %1008 = vmatprep.subr.bf16.mxu0 0
    %1009 = vmatpush1.bf16.msra.mxu0 0
    %1010 = vmatprep.subr.bf16.mxu0 0
    %1011 = vmatpush1.bf16.msra.mxu0 0
    %1012 = vmatprep.subr.bf16.mxu0 0
    %1013 = vmatpush1.bf16.msra.mxu0 0
    %1014 = vmatprep.subr.bf16.mxu0 0
    %1015 = vmatpush1.bf16.msra.mxu0 0
    %1016 = vmatprep.subr.bf16.mxu0 0
    %1017 = vmatpush1.bf16.msra.mxu0 0
    %1018 = vmatprep.subr.bf16.mxu0 0
    %1019 = vmatpush1.bf16.msra.mxu0 0
    %1020 = vmatprep.subr.bf16.mxu0 0
    %1021 = vmatpush1.bf16.msra.mxu0 0
    %1022 = vmatprep.subr.bf16.mxu0 0
    %1023 = vmatpush1.bf16.msra.mxu0 0
    %1024 = vmatprep.subr.bf16.mxu0 0
    %1025 = vmatpush1.bf16.msra.mxu0 0
    %1026 = vmatprep.subr.bf16.mxu0 0
    %1027 = vmatpush1.bf16.msra.mxu0 0
    %1028 = vmatprep.subr.bf16.mxu0 0
    %1029 = vmatpush1.bf16.msra.mxu0 0
    %1030 = vmatprep.mubr.bf16.mxu0 0
    %1031 = vmatmul.mubr.bf16.gmra.mrb[0].mxu0 %v993
    %v1032 = vpop.f32.mrb[0].mxu0
    %v1033 = vadd.f32 0.0, %v1032
    %v1034 = vpop.f32.mrb[0].mxu0
    %v1035 = vpop.f32.mrb[0].mxu0
    %v1036 = vpop.f32.mrb[0].mxu0
    %1037 = vdwg.mxu0
    %v1039 = vsel %vm68, %v805, 0
    %v1042 = vsel %vm81, %v341, 0
    %1044 = vmatprep.subr.bf16.mxu0 0
    %1045 = vmatpush1.bf16.msra.mxu0 %v1042
    %1046 = vmatprep.subr.bf16.mxu0 0
    %1047 = vmatpush1.bf16.msra.mxu0 0
    %1048 = vmatprep.subr.bf16.mxu0 0
    %1049 = vmatpush1.bf16.msra.mxu0 0
    %1050 = vmatprep.subr.bf16.mxu0 0
    %1051 = vmatpush1.bf16.msra.mxu0 0
    %1052 = vmatprep.subr.bf16.mxu0 0
    %1053 = vmatpush1.bf16.msra.mxu0 0
    %1054 = vmatprep.subr.bf16.mxu0 0
    %1055 = vmatpush1.bf16.msra.mxu0 0
    %1056 = vmatprep.subr.bf16.mxu0 0
    %1057 = vmatpush1.bf16.msra.mxu0 0
    %1058 = vmatprep.subr.bf16.mxu0 0
    %1059 = vmatpush1.bf16.msra.mxu0 0
    %1060 = vmatprep.subr.bf16.mxu0 0
    %1061 = vmatpush1.bf16.msra.mxu0 0
    %1062 = vmatprep.subr.bf16.mxu0 0
    %1063 = vmatpush1.bf16.msra.mxu0 0
    %1064 = vmatprep.subr.bf16.mxu0 0
    %1065 = vmatpush1.bf16.msra.mxu0 0
    %1066 = vmatprep.subr.bf16.mxu0 0
    %1067 = vmatpush1.bf16.msra.mxu0 0
    %1068 = vmatprep.subr.bf16.mxu0 0
    %1069 = vmatpush1.bf16.msra.mxu0 0
    %1070 = vmatprep.subr.bf16.mxu0 0
    %1071 = vmatpush1.bf16.msra.mxu0 0
    %1072 = vmatprep.subr.bf16.mxu0 0
    %1073 = vmatpush1.bf16.msra.mxu0 0
    %1074 = vmatprep.subr.bf16.mxu0 0
    %1075 = vmatpush1.bf16.msra.mxu0 0
    %1076 = vmatprep.mubr.bf16.mxu0 0
    %1077 = vmatmul.mubr.bf16.gmra.mrb[0].mxu0 %v1039
    %v1078 = vpop.f32.mrb[0].mxu0
    %v1079 = vadd.f32 0.0, %v1078
    %v1080 = vpop.f32.mrb[0].mxu0
    %v1081 = vpop.f32.mrb[0].mxu0
    %v1082 = vpop.f32.mrb[0].mxu0
    %1083 = vdwg.mxu0
    %v1085 = vsel %vm68, %v806, 0
    %v1088 = vsel %vm81, %v342, 0
    %1090 = vmatprep.subr.bf16.mxu0 0
    %1091 = vmatpush1.bf16.msra.mxu0 %v1088
    %1092 = vmatprep.subr.bf16.mxu0 0
    %1093 = vmatpush1.bf16.msra.mxu0 0
    %1094 = vmatprep.subr.bf16.mxu0 0
    %1095 = vmatpush1.bf16.msra.mxu0 0
    %1096 = vmatprep.subr.bf16.mxu0 0
    %1097 = vmatpush1.bf16.msra.mxu0 0
    %1098 = vmatprep.subr.bf16.mxu0 0
    %1099 = vmatpush1.bf16.msra.mxu0 0
    %1100 = vmatprep.subr.bf16.mxu0 0
    %1101 = vmatpush1.bf16.msra.mxu0 0
    %1102 = vmatprep.subr.bf16.mxu0 0
    %1103 = vmatpush1.bf16.msra.mxu0 0
    %1104 = vmatprep.subr.bf16.mxu0 0
    %1105 = vmatpush1.bf16.msra.mxu0 0
    %1106 = vmatprep.subr.bf16.mxu0 0
    %1107 = vmatpush1.bf16.msra.mxu0 0
    %1108 = vmatprep.subr.bf16.mxu0 0
    %1109 = vmatpush1.bf16.msra.mxu0 0
    %1110 = vmatprep.subr.bf16.mxu0 0
    %1111 = vmatpush1.bf16.msra.mxu0 0
    %1112 = vmatprep.subr.bf16.mxu0 0
    %1113 = vmatpush1.bf16.msra.mxu0 0
    %1114 = vmatprep.subr.bf16.mxu0 0
    %1115 = vmatpush1.bf16.msra.mxu0 0
    %1116 = vmatprep.subr.bf16.mxu0 0
    %1117 = vmatpush1.bf16.msra.mxu0 0
    %1118 = vmatprep.subr.bf16.mxu0 0
    %1119 = vmatpush1.bf16.msra.mxu0 0
    %1120 = vmatprep.subr.bf16.mxu0 0
    %1121 = vmatpush1.bf16.msra.mxu0 0
    %1122 = vmatprep.mubr.bf16.mxu0 0
    %1123 = vmatmul.mubr.bf16.gmra.mrb[0].mxu0 %v1085
    %v1124 = vpop.f32.mrb[0].mxu0
    %v1125 = vadd.f32 0.0, %v1124
    %v1126 = vpop.f32.mrb[0].mxu0
    %v1127 = vpop.f32.mrb[0].mxu0
    %v1128 = vpop.f32.mrb[0].mxu0
    %1129 = vdwg.mxu0
    %v1131 = vsel %vm68, %v807, 0
    %v1134 = vsel %vm81, %v343, 0
    %1136 = vmatprep.subr.bf16.mxu0 0
    %1137 = vmatpush1.bf16.msra.mxu0 %v1134
    %1138 = vmatprep.subr.bf16.mxu0 0
    %1139 = vmatpush1.bf16.msra.mxu0 0
    %1140 = vmatprep.subr.bf16.mxu0 0
    %1141 = vmatpush1.bf16.msra.mxu0 0
    %1142 = vmatprep.subr.bf16.mxu0 0
    %1143 = vmatpush1.bf16.msra.mxu0 0
    %1144 = vmatprep.subr.bf16.mxu0 0
    %1145 = vmatpush1.bf16.msra.mxu0 0
    %1146 = vmatprep.subr.bf16.mxu0 0
    %1147 = vmatpush1.bf16.msra.mxu0 0
    %1148 = vmatprep.subr.bf16.mxu0 0
    %1149 = vmatpush1.bf16.msra.mxu0 0
    %1150 = vmatprep.subr.bf16.mxu0 0
    %1151 = vmatpush1.bf16.msra.mxu0 0
    %1152 = vmatprep.subr.bf16.mxu0 0
    %1153 = vmatpush1.bf16.msra.mxu0 0
    %1154 = vmatprep.subr.bf16.mxu0 0
    %1155 = vmatpush1.bf16.msra.mxu0 0
    %1156 = vmatprep.subr.bf16.mxu0 0
    %1157 = vmatpush1.bf16.msra.mxu0 0
    %1158 = vmatprep.subr.bf16.mxu0 0
    %1159 = vmatpush1.bf16.msra.mxu0 0
    %1160 = vmatprep.subr.bf16.mxu0 0
    %1161 = vmatpush1.bf16.msra.mxu0 0
    %1162 = vmatprep.subr.bf16.mxu0 0
    %1163 = vmatpush1.bf16.msra.mxu0 0
    %1164 = vmatprep.subr.bf16.mxu0 0
    %1165 = vmatpush1.bf16.msra.mxu0 0
    %1166 = vmatprep.subr.bf16.mxu0 0
    %1167 = vmatpush1.bf16.msra.mxu0 0
    %1168 = vmatprep.mubr.bf16.mxu0 0
    %1169 = vmatmul.mubr.bf16.gmra.mrb[0].mxu0 %v1131
    %v1170 = vpop.f32.mrb[0].mxu0
    %v1171 = vadd.f32 0.0, %v1170
    %v1172 = vpop.f32.mrb[0].mxu0
    %v1173 = vpop.f32.mrb[0].mxu0
    %v1174 = vpop.f32.mrb[0].mxu0
    %1175 = vdwg.mxu0
    %1176 = vst.msk [vmem:[#allocation2] sm:$0xff] %vm68, %v849
    %1177 = vst.msk [vmem:[#allocation2 + $0x8] sm:$0xff] %vm68, %v1033
    %1180 = vrot.lane.b32.xlu0 %v895, 8
    %v1181 = vpop.permute.xlu0 %1180
    %1182 = vrot.lane.b32.xlu0 %v1079, 8
    %v1183 = vpop.permute.xlu0 %1182
    %vm1186 = vcmask 130112
    %1187 = vst.msk [vmem:[#allocation2] sm:$0xff] %vm1186, %v1181
    %1188 = vst.msk [vmem:[#allocation2 + $0x8] sm:$0xff] %vm1186, %v1183
    %1191 = vrot.lane.b32.xlu0 %v941, 16
    %v1192 = vpop.permute.xlu0 %1191
    %1193 = vrot.lane.b32.xlu0 %v1125, 16
    %v1194 = vpop.permute.xlu0 %1193
    %vm1197 = vcmask 195712
    %1198 = vst.msk [vmem:[#allocation2] sm:$0xff] %vm1197, %v1192
    %1199 = vst.msk [vmem:[#allocation2 + $0x8] sm:$0xff] %vm1197, %v1194
    %1202 = vrot.lane.b32.xlu0 %v987, 24
    %v1203 = vpop.permute.xlu0 %1202
    %1204 = vrot.lane.b32.xlu0 %v1171, 24
    %v1205 = vpop.permute.xlu0 %1204
    %vm1208 = vcmask 261312
    %1209 = vst.msk [vmem:[#allocation2] sm:$0xff] %vm1208, %v1203
    %1210 = vst.msk [vmem:[#allocation2 + $0x8] sm:$0xff] %vm1208, %v1205
    %v1211 = vld [vmem:[#allocation2] sm:$0xff]
    %v1212 = vld [vmem:[#allocation2 + $0x8] sm:$0xff]
    %v1213 = vpack.c.bf16 %v1212, %v1211
    %v1214 = vld [vmem:[%s6] sm:$0xf]
    %v1215 = vld [vmem:[%s6 + $0x4] sm:$0xf]
    %v1216 = vld [vmem:[%s6 + $0x8] sm:$0xf]
    %v1217 = vld [vmem:[%s6 + $0xc] sm:$0xf]
    %v1218 = vld [vmem:[%s7] sm:$0x1]
    %v1220 = vlaneseq
    %v1221 = vshrl.u32 %v1220, 7
    %v1222 = vsub.s32 0, %v1221
    %v1223 = vrot.slane %v1218, %v1222
    %v1229 = vunpack.c.l.b16 %v1214
    %v1230 = vunpack.c.l.b16 %v1215
    %v1231 = vunpack.c.l.b16 %v1216
    %v1232 = vunpack.c.l.b16 %v1217
    %v1233 = vpack.c.b16 %v1230, %v1229
    %v1234 = vpack.c.b16 %v1232, %v1231
    %vm1237 = vcmask 261120
    %v1239 = vsel %vm1237, %v1213, 0
    %1241 = vmatprep.subr.bf16.mxu0 0
    %1242 = vmatpush1.bf16.msra.mxu0 %v1233
    %1243 = vmatprep.subr.bf16.mxu0 0
    %1244 = vmatpush1.bf16.msra.mxu0 %v1234
    %1245 = vmatprep.subr.bf16.mxu0 0
    %1246 = vmatpush1.bf16.msra.mxu0 0
    %1247 = vmatprep.subr.bf16.mxu0 0
    %1248 = vmatpush1.bf16.msra.mxu0 0
    %1249 = vmatprep.subr.bf16.mxu0 0
    %1250 = vmatpush1.bf16.msra.mxu0 0
    %1251 = vmatprep.subr.bf16.mxu0 0
    %1252 = vmatpush1.bf16.msra.mxu0 0
    %1253 = vmatprep.subr.bf16.mxu0 0
    %1254 = vmatpush1.bf16.msra.mxu0 0
    %1255 = vmatprep.subr.bf16.mxu0 0
    %1256 = vmatpush1.bf16.msra.mxu0 0
    %1257 = vmatprep.subr.bf16.mxu0 0
    %1258 = vmatpush1.bf16.msra.mxu0 0
    %1259 = vmatprep.subr.bf16.mxu0 0
    %1260 = vmatpush1.bf16.msra.mxu0 0
    %1261 = vmatprep.subr.bf16.mxu0 0
    %1262 = vmatpush1.bf16.msra.mxu0 0
    %1263 = vmatprep.subr.bf16.mxu0 0
    %1264 = vmatpush1.bf16.msra.mxu0 0
    %1265 = vmatprep.subr.bf16.mxu0 0
    %1266 = vmatpush1.bf16.msra.mxu0 0
    %1267 = vmatprep.subr.bf16.mxu0 0
    %1268 = vmatpush1.bf16.msra.mxu0 0
    %1269 = vmatprep.subr.bf16.mxu0 0
    %1270 = vmatpush1.bf16.msra.mxu0 0
    %1271 = vmatprep.subr.bf16.mxu0 0
    %1272 = vmatpush1.bf16.msra.mxu0 0
    %1273 = vmatprep.mubr.bf16.mxu0 0
    %1274 = vmatmul.mubr.bf16.gmra.mrb[0].mxu0 %v1239
    %v1275 = vpop.f32.mrb[0].mxu0
    %v1276 = vadd.f32 %v1223, %v1275
    %v1277 = vpop.f32.mrb[0].mxu0
    %v1278 = vpop.f32.mrb[0].mxu0
    %v1279 = vadd.f32 %v1223, %v1278
    %v1280 = vpop.f32.mrb[0].mxu0
    %1281 = vdwg.mxu0
    %1282 = vst.msk [vmem:[#allocation3] sm:$0xff] %vm1237, %v1276
    %1283 = vst.msk [vmem:[#allocation3 + $0x8] sm:$0xff] %vm1237, %v1279
    // Predicated region
    $region34: #{self_attention_pallas.1} parent=1 // pred_check
      _
    $region35: #{self_attention_pallas.1} parent=1 // pred_check_branch
      %1285 = sbr.rel (0) target = $region37
    $region36: #{self_attention_pallas.1} parent=1 // pred_region
      %s1287 = ssub.s32 256, 256
      %1288 = vsyncadd [#allocation4], %s1287
      %s1289 = sshll.u32 [#allocation3], 4
      %s1290 = int_to_ptr.vmem [resolvable:$true] %s1289
      %1295 = dma.vmem_to_hbm [thread:$0]  %s1290, 256, %s8, [#allocation4], 128, 128, 8
    $region37: #{self_attention_pallas.1} parent=1 // pred_fallthru
      _
    // Predicated region
    $region38: #{self_attention_pallas.1} parent=1 // pred_check
      _
    $region39: #{self_attention_pallas.1} parent=1 // pred_check_branch
      %1297 = sbr.rel (0) target = $region41
    $region40: #{self_attention_pallas.1} parent=1 // pred_region
      %1298 = dma.done [#allocation4], 256
    $region41: #{self_attention_pallas.1} parent=1 // pred_fallthru
      _
    %1299 = vsyncpa [#allocation4], 1

</llo_original>
